<compile_context>
chip_gen: v5e
topology: v5e:2x2
jax: 0.10.0
libtpu: 0.0.40
codegen_flags: <defaults>
</compile_context>

<pallas_src>
import jax
import jax.numpy as jnp
from jax.experimental import pallas as pl
from jax.experimental.pallas import tpu as pltpu

MIB = 1024 * 1024
_TILE_CANDIDATES = (2048, 1024, 512, 256, 128)


def _dae_decoder_kernel(ne_i_ref, ne_j_ref, n_j_ref, attr_ref, adj_ref):
    """One (i, j) output tile of both matmuls.

    ne_i_ref: (tm, D)  row tile of ne_feature (shared LHS, reused over j)
    ne_j_ref: (tn, D)  column tile of ne_feature
    n_j_ref : (tn, D)  column tile of n_feature
    attr_ref: (tm, tn) decode_attribute tile
    adj_ref : (tm, tn) decode_adj tile
    """
    dn = (((1,), (1,)), ((), ()))  # contract last dims: A @ B^T, no RHS transpose
    lhs = ne_i_ref[...]

    # decode_adj tile: sigmoid(ne_i @ ne_j^T), f32 MXU accumulation.
    logits = jax.lax.dot_general(lhs, ne_j_ref[...], dn,
                                 preferred_element_type=jnp.float32)
    # sigmoid via exp + approx reciprocal: both on the EUP slot (no VPU divide).
    adj = pl.reciprocal(1.0 + jnp.exp(-logits), approx=True)
    adj_ref[...] = adj.astype(adj_ref.dtype)

    # decode_attribute tile: ne_i @ n_j^T, streamed straight to the output.
    attr = jax.lax.dot_general(lhs, n_j_ref[...], dn,
                               preferred_element_type=jnp.float32)
    attr_ref[...] = attr.astype(attr_ref.dtype)


def _vmem_capacity_bytes():
    try:
        return int(pltpu.get_tpu_info().vmem_capacity_bytes)
    except Exception:
        return 64 * MIB  # conservative (v7x per-TensorCore)


def _step_bytes(tm, tn, d, in_bytes, attr_bytes, adj_bytes):
    """Per-grid-step VMEM working set (double-buffered by the pipeline)."""
    inp = 2 * (tm + 2 * tn) * d * in_bytes          # lhs + ne_j + n_j tiles
    out = 2 * tm * tn * (attr_bytes + adj_bytes)    # attr + adj tiles
    acc = 2 * tm * tn * 4                           # f32 MXU results / epilogue scratch
    return inp + out + acc


def _largest_tile(n, cap):
    # Largest candidate <= cap that still leaves >= 2 blocks along the axis
    # (keeps the axis shardable across v7x's two TensorCores).
    for t in _TILE_CANDIDATES:
        if t <= cap and pl.cdiv(n, t) >= 2:
            return t
    return 128


def _pick_tiles(n, d, in_bytes, attr_bytes, adj_bytes, vmem_budget):
    tm = _largest_tile(n, cap=2048)
    tn = _largest_tile(n, cap=1024)
    while (_step_bytes(tm, tn, d, in_bytes, attr_bytes, adj_bytes) > vmem_budget
           and max(tm, tn) > 128):
        if tm >= tn:
            tm = max(tm // 2, 128)
        else:
            tn = max(tn // 2, 128)
    return tm, tn


def dae_decoder(
    n_feature,
    ne_feature,
    *,
    tm=None,
    tn=None,
    compute_dtype=jnp.bfloat16,
    attr_dtype=jnp.bfloat16,
    adj_dtype=jnp.bfloat16,
):
    """Pallas implementation of DAE_Decoder.forward (eval mode).

    Args:
      n_feature:  [N, D] float array.
      ne_feature: [N, D] float array.
    Returns:
      (decode_attribute [N, N], decode_adj [N, N])

    Note: compute_dtype=bf16 + bf16 outputs is a deliberate precision/bandwidth
    trade vs the PyTorch f32 matmuls (errors ~1e-2 scale). Pass
    compute_dtype=jnp.float32 and attr_dtype/adj_dtype=jnp.float32 for closer
    parity at the cost of bandwidth.
    """
    N, D = ne_feature.shape
    assert n_feature.shape == (N, D), "n_feature and ne_feature must share [N, D]"

    in_bytes = jnp.dtype(compute_dtype).itemsize
    attr_bytes = jnp.dtype(attr_dtype).itemsize
    adj_bytes = jnp.dtype(adj_dtype).itemsize

    vmem_cap = _vmem_capacity_bytes()
    vmem_budget = max(vmem_cap - 16 * MIB, 32 * MIB)

    if tm is None or tn is None:
        auto_tm, auto_tn = _pick_tiles(N, D, in_bytes, attr_bytes, adj_bytes,
                                       vmem_budget)
        tm = tm or auto_tm
        tn = tn or auto_tn
    step = _step_bytes(tm, tn, D, in_bytes, attr_bytes, adj_bytes)
    vmem_limit = int(min(max(2 * step, 32 * MIB), vmem_budget))

    grid = (pl.cdiv(N, tm), pl.cdiv(N, tn))

    in_specs = [
        # LHS row tile: block index constant across the inner (j) axis, so its
        # HBM->VMEM DMA is skipped after the first j step.
        pl.BlockSpec((tm, D), lambda i, j: (i, 0)),
        pl.BlockSpec((tn, D), lambda i, j: (j, 0)),   # ne column tile
        pl.BlockSpec((tn, D), lambda i, j: (j, 0)),   # n  column tile
    ]
    out_specs = [
        pl.BlockSpec((tm, tn), lambda i, j: (i, j)),  # decode_attribute
        pl.BlockSpec((tm, tn), lambda i, j: (i, j)),  # decode_adj
    ]
    out_shape = [
        jax.ShapeDtypeStruct((N, N), attr_dtype),
        jax.ShapeDtypeStruct((N, N), adj_dtype),
    ]

    n_row_blocks = pl.cdiv(N, tm)
    cost = pl.CostEstimate(
        flops=2 * 2 * N * N * D,                      # two N x N x D matmuls
        transcendentals=2 * N * N,                    # exp + reciprocal per adj elem
        bytes_accessed=(N * D * in_bytes              # LHS read once
                        + 2 * n_row_blocks * N * D * in_bytes  # RHS re-streamed
                        + N * N * (attr_bytes + adj_bytes)),   # outputs
    )

    fn = pl.pallas_call(
        _dae_decoder_kernel,
        grid_spec=pl.GridSpec(grid=grid, in_specs=in_specs, out_specs=out_specs),
        out_shape=out_shape,
        compiler_params=pltpu.CompilerParams(
            dimension_semantics=("parallel", "parallel"),
            vmem_limit_bytes=vmem_limit,
        ),
        cost_estimate=cost,
    )

    ne_c = ne_feature.astype(compute_dtype)
    n_c = n_feature.astype(compute_dtype)
    decode_attribute, decode_adj = fn(ne_c, ne_c, n_c)
    return decode_attribute, decode_adj


if __name__ == "__main__":
    # Small, tile-friendly shapes: N nodes, D feature dim -> grid (2, 2).
    N, D = 512, 128
    key = jax.random.PRNGKey(0)
    k1, k2 = jax.random.split(key)
    n_feature = jax.random.normal(k1, (N, D), dtype=jnp.float32) * 0.1
    ne_feature = jax.random.normal(k2, (N, D), dtype=jnp.float32) * 0.1

    decode_attribute, decode_adj = dae_decoder(n_feature, ne_feature)
    jax.block_until_ready((decode_attribute, decode_adj))

    assert decode_attribute.shape == (N, N) and decode_adj.shape == (N, N)

    # Reference in the same bf16-operand / f32-accumulate precision
    # (kernel outputs are bf16, so tolerances cover the final bf16 cast too).
    dn = (((1,), (1,)), ((), ()))
    ne_b = ne_feature.astype(jnp.bfloat16)
    n_b = n_feature.astype(jnp.bfloat16)
    ref_attr = jax.lax.dot_general(ne_b, n_b, dn, preferred_element_type=jnp.float32)
    ref_adj = jax.nn.sigmoid(
        jax.lax.dot_general(ne_b, ne_b, dn, preferred_element_type=jnp.float32)
    )
    attr_f32 = decode_attribute.astype(jnp.float32)
    adj_f32 = decode_adj.astype(jnp.float32)
    assert jnp.allclose(attr_f32, ref_attr, atol=8e-3, rtol=8e-3)
    assert jnp.allclose(adj_f32, ref_adj, atol=8e-3, rtol=8e-3)

    # Sanity vs full-f32 semantics of the PyTorch module (looser tolerance:
    # bf16 MXU operands + bf16 outputs).
    ref_attr_f = ne_feature @ n_feature.T
    ref_adj_f = jax.nn.sigmoid(ne_feature @ ne_feature.T)
    assert jnp.allclose(attr_f32, ref_attr_f, atol=3e-2)
    assert jnp.allclose(adj_f32, ref_adj_f, atol=3e-2)

    print("KERNEL_OK")
</pallas_src>

<mosaic_0001>
module attributes {stable_mosaic.version = 11 : i64} {
  func.func @_dae_decoder_kernel(%arg0: i32, %arg1: i32, %arg2: memref<256x128xbf16, #tpu.memory_space<vmem>>, %arg3: memref<256x128xbf16, #tpu.memory_space<vmem>>, %arg4: memref<256x128xbf16, #tpu.memory_space<vmem>>, %arg5: memref<256x256xbf16, #tpu.memory_space<vmem>>, %arg6: memref<256x256xbf16, #tpu.memory_space<vmem>>) attributes {dimension_semantics = [#tpu.dimension_semantics<parallel>, #tpu.dimension_semantics<parallel>], iteration_bounds = array<i64: 2, 2>, scalar_prefetch = 0 : i64, scratch_operands = 0 : i64, tpu.core_type = #tpu.core_type<tc>, window_params = [{transform_indices = @transform_0, window_bounds = array<i64: 256, 128>}, {transform_indices = @transform_1, window_bounds = array<i64: 256, 128>}, {transform_indices = @transform_2, window_bounds = array<i64: 256, 128>}, {transform_indices = @transform_3, window_bounds = array<i64: 256, 256>}, {transform_indices = @transform_4, window_bounds = array<i64: 256, 256>}]} {
    %c0 = arith.constant 0 : index
    %c0_0 = arith.constant 0 : index
    %0 = vector.load %arg2[%c0, %c0_0] : memref<256x128xbf16, #tpu.memory_space<vmem>>, vector<256x128xbf16>
    %c0_1 = arith.constant 0 : index
    %c0_2 = arith.constant 0 : index
    %1 = vector.load %arg3[%c0_1, %c0_2] : memref<256x128xbf16, #tpu.memory_space<vmem>>, vector<256x128xbf16>
    %cst = arith.constant dense<0.000000e+00> : vector<256x256xf32>
    %2 = tpu.matmul %0, %1, %cst {dimension_numbers = #tpu.dot_dimension_numbers<[1], [1], [0], [0], [0, 0, 1, 0], [], []>} : vector<256x128xbf16>, vector<256x128xbf16>, vector<256x256xf32> -> vector<256x256xf32>
    %cst_3 = arith.constant 0.000000e+00 : f32
    %3 = vector.broadcast %cst_3 : f32 to vector<256x256xf32>
    %4 = arith.subf %3, %2 : vector<256x256xf32>
    %5 = math.exp %4 : vector<256x256xf32>
    %cst_4 = arith.constant 1.000000e+00 : f32
    %6 = vector.broadcast %cst_4 : f32 to vector<256x256xf32>
    %7 = arith.addf %6, %5 : vector<256x256xf32>
    %8 = tpu.reciprocal %7 {approx = true} : vector<256x256xf32> -> vector<256x256xf32>
    %9 = arith.truncf %8 : vector<256x256xf32> to vector<256x256xbf16>
    %c0_5 = arith.constant 0 : index
    %c0_6 = arith.constant 0 : index
    %10 = vector.load %arg6[%c0_5, %c0_6] : memref<256x256xbf16, #tpu.memory_space<vmem>>, vector<256x256xbf16>
    tpu.vector_store %arg6[%c0_5, %c0_6], %9 {strides = array<i32>} : memref<256x256xbf16, #tpu.memory_space<vmem>>, vector<256x256xbf16>,
    %c0_7 = arith.constant 0 : index
    %c0_8 = arith.constant 0 : index
    %11 = vector.load %arg4[%c0_7, %c0_8] : memref<256x128xbf16, #tpu.memory_space<vmem>>, vector<256x128xbf16>
    %cst_9 = arith.constant dense<0.000000e+00> : vector<256x256xf32>
    %12 = tpu.matmul %0, %11, %cst_9 {dimension_numbers = #tpu.dot_dimension_numbers<[1], [1], [0], [0], [0, 0, 1, 0], [], []>} : vector<256x128xbf16>, vector<256x128xbf16>, vector<256x256xf32> -> vector<256x256xf32>
    %13 = arith.truncf %12 : vector<256x256xf32> to vector<256x256xbf16>
    %c0_10 = arith.constant 0 : index
    %c0_11 = arith.constant 0 : index
    %14 = vector.load %arg5[%c0_10, %c0_11] : memref<256x256xbf16, #tpu.memory_space<vmem>>, vector<256x256xbf16>
    tpu.vector_store %arg5[%c0_10, %c0_11], %13 {strides = array<i32>} : memref<256x256xbf16, #tpu.memory_space<vmem>>, vector<256x256xbf16>,
    return
  }
  func.func @transform_0(%arg0: i32, %arg1: i32) -> (i32, i32) {
    %c0_i32 = arith.constant 0 : i32
    %c0_i32_0 = arith.constant 0 : i32
    return %arg0, %c0_i32 : i32, i32
  }
  func.func @transform_1(%arg0: i32, %arg1: i32) -> (i32, i32) {
    %c0_i32 = arith.constant 0 : i32
    %c0_i32_0 = arith.constant 0 : i32
    return %arg1, %c0_i32 : i32, i32
  }
  func.func @transform_2(%arg0: i32, %arg1: i32) -> (i32, i32) {
    %c0_i32 = arith.constant 0 : i32
    %c0_i32_0 = arith.constant 0 : i32
    return %arg1, %c0_i32 : i32, i32
  }
  func.func @transform_3(%arg0: i32, %arg1: i32) -> (i32, i32) {
    %c0_i32 = arith.constant 0 : i32
    return %arg0, %arg1 : i32, i32
  }
  func.func @transform_4(%arg0: i32, %arg1: i32) -> (i32, i32) {
    %c0_i32 = arith.constant 0 : i32
    return %arg0, %arg1 : i32, i32
  }
}

</mosaic_0001>

<llo_original>
// kernel: tpu_custom_call.1
$region0: #{tpu_custom_call.1}
  #allocation0 [shape = 'u32[]', space=smem, size = 0x4, offset = 0x4, fixed_abs, tag = 'smem constant byte address 0x4 - core index']
  #allocation1 [shape = 'u32[72,128]{1,0:T(1,128)}', space=vmem, size = 0x9000, scoped, tag = 'internal scratch']
  %s0 = inlined_call_operand.hbm [shape: bf16[512,128], index: 0, kind: input, shape index: {}]
  %s1 = inlined_call_operand.hbm [shape: bf16[512,128], index: 1, kind: input, shape index: {}]
  %s2 = inlined_call_operand.hbm [shape: bf16[512,128], index: 2, kind: input, shape index: {}]
  %s3 = inlined_call_operand.hbm [shape: bf16[512,512], index: 3, kind: output, shape index: {0}]
  %s4 = inlined_call_operand.hbm [shape: bf16[512,512], index: 4, kind: output, shape index: {1}]
  %5 = xla_tuple %s3, %s4
  %s6 = sld [smem:[#allocation0]]
  $region65: #{tpu_custom_call.1} parent=0
    _
  %s8 = ssub.s32 1, %s6
  %s9 = scalar_select 0, %s8, %s6
  $region1: #{tpu_custom_call.1} parent=0
    #allocation2 [shape = 'u8[131072]{0}', space=vmem, size = 0x20000, scoped, tag = 'input window, operand 0']
    #allocation3 [shape = 's32[2]{0}', space=sflag, size = 0x8, scoped, tag = 'scoped memory for tpu_custom_call.1']
    #allocation4 [shape = 's32[2]{0}', space=sflag, size = 0x8, scoped, tag = 'scoped memory for tpu_custom_call.1']
    #allocation5 [shape = 'u8[131072]{0}', space=vmem, size = 0x20000, scoped, tag = 'input window, operand 1']
    #allocation6 [shape = 's32[2]{0}', space=sflag, size = 0x8, scoped, tag = 'scoped memory for tpu_custom_call.1']
    #allocation7 [shape = 'u8[131072]{0}', space=vmem, size = 0x20000, scoped, tag = 'input window, operand 2']
    #allocation8 [shape = 'u8[262144]{0}', space=vmem, size = 0x40000, scoped, tag = 'output window, operand 0']
    #allocation9 [shape = 'u8[262144]{0}', space=vmem, size = 0x40000, scoped, tag = 'output window, operand 1']
    #allocation10 [shape = 's32[2]{0}', space=sflag, size = 0x8, scoped, tag = 'scoped memory for tpu_custom_call.1']
    %10 = vsyncpa [#allocation3], 0
    %s11 = scalar_lea.sflag [#allocation3], 1
    %12 = vsyncpa %s11, 0
    %13 = vsyncpa [#allocation6], 0
    %s14 = scalar_lea.sflag [#allocation6], 1
    %15 = vsyncpa %s14, 0
    %16 = vsyncpa [#allocation4], 0
    %s17 = scalar_lea.sflag [#allocation4], 1
    %18 = vsyncpa %s17, 0
    %19 = vsyncpa [#allocation10], 0
    %s20 = scalar_lea.sflag [#allocation10], 1
    %21 = vsyncpa %s20, 0
    loop: start=0, step=1, limit=6
    $region2: #{tpu_custom_call.1} parent=1 // loop_pre_header
      _
    $region3: #{tpu_custom_call.1} parent=1 // loop_header
      %s23 = sphi 0, %s27
      %p24 = scmp.ge.s32.totalorder %s23, 6
      %s30 = sphi 0, %s42
      %s31 = sphi 0, %s38
      %s32 = sphi 0, %s30
      %s33 = sphi 0, %s31
      %s34 = sphi 0, %s32
      %s35 = sphi 0, %s33
      %s45 = sphi 0, %s47
      %s48 = sphi 0, %s45
      %s49 = sphi 0, %s48
      %s65 = sphi 0, %s49
      %s71 = sphi 0, %s73
      %s74 = sphi 0, %s71
      %s75 = sphi 0, %s74
      %s91 = sphi 0, %s75
      %s97 = sphi 0, %s99
      %s100 = sphi 0, %s97
      %s101 = sphi 0, %s100
      %s117 = sphi 0, %s101
      %s125 = sphi 0, %s127
      %s128 = sphi 0, %s125
      %s129 = sphi 0, %s128
      %s145 = sphi 0, %s129
      %s153 = sphi 0, %s155
      %s156 = sphi 0, %s153
      %s157 = sphi 0, %s156
      %s173 = sphi 0, %s157
    $region4: #{tpu_custom_call.1} parent=1 // loop_header_branch
      %26 = sbr.rel (%p24) target = $region8
    $region5: #{tpu_custom_call.1} parent=1 // loop_body
      %s28 = ssub.s32 %s23, 1
      %s29 = ssub.s32 %s23, 2
      %s36 = sadd.s32 1, %s31
      %p37 = scmp.ge.s32.totalorder %s36, 2
      %s38 = scalar_select %p37, 0, %s36
      %s39 = sadd.s32 1, %s30
      %s40 = scalar_select %p37, %s39, %s30
      %p41 = scmp.ge.s32.totalorder %s40, 2
      %s42 = scalar_select %p41, 0, %s40
      %s43 = ssub.s32 %s30, %s42
      %p44 = scmp.eq.s32.totalorder %s43, 0
      %s46 = sadd.s32 %s45, 1
      %s47 = scalar_select %p44, %s45, %s46
      %p50 = pneg %p44
      %p51 = scmp.eq.s32.totalorder %s23, 3
      %p52 = por %p50, %p51
      %p53 = scmp.ne.s32.totalorder %s45, %s48
      %p54 = scmp.eq.s32.totalorder %s23, 0
      %p55 = por %p53, %p54
      %p56 = scmp.ne.s32.totalorder %s45, %s48
      %p57 = scmp.eq.s32.totalorder %s28, 3
      %p58 = por %p56, %p57
      %p59 = scmp.ne.s32.totalorder %s48, %s49
      %p60 = scmp.eq.s32.totalorder %s28, 0
      %p61 = por %p59, %p60
      %p62 = scmp.ne.s32.totalorder %s48, %s49
      %p63 = scmp.eq.s32.totalorder %s29, 3
      %p64 = por %p62, %p63
      %p66 = scmp.ne.s32.totalorder %s49, %s65
      %p67 = scmp.eq.s32.totalorder %s29, 0
      %p68 = por %p66, %p67
      %s69 = ssub.s32 %s31, %s38
      %p70 = scmp.eq.s32.totalorder %s69, 0
      %s72 = sadd.s32 %s71, 1
      %s73 = scalar_select %p70, %s71, %s72
      %p76 = pneg %p70
      %p77 = scmp.eq.s32.totalorder %s23, 3
      %p78 = por %p76, %p77
      %p79 = scmp.ne.s32.totalorder %s71, %s74
      %p80 = scmp.eq.s32.totalorder %s23, 0
      %p81 = por %p79, %p80
      %p82 = scmp.ne.s32.totalorder %s71, %s74
      %p83 = scmp.eq.s32.totalorder %s28, 3
      %p84 = por %p82, %p83
      %p85 = scmp.ne.s32.totalorder %s74, %s75
      %p86 = scmp.eq.s32.totalorder %s28, 0
      %p87 = por %p85, %p86
      %p88 = scmp.ne.s32.totalorder %s74, %s75
      %p89 = scmp.eq.s32.totalorder %s29, 3
      %p90 = por %p88, %p89
      %p92 = scmp.ne.s32.totalorder %s75, %s91
      %p93 = scmp.eq.s32.totalorder %s29, 0
      %p94 = por %p92, %p93
      %s95 = ssub.s32 %s31, %s38
      %p96 = scmp.eq.s32.totalorder %s95, 0
      %s98 = sadd.s32 %s97, 1
      %s99 = scalar_select %p96, %s97, %s98
      %p102 = pneg %p96
      %p103 = scmp.eq.s32.totalorder %s23, 3
      %p104 = por %p102, %p103
      %p105 = scmp.ne.s32.totalorder %s97, %s100
      %p106 = scmp.eq.s32.totalorder %s23, 0
      %p107 = por %p105, %p106
      %p108 = scmp.ne.s32.totalorder %s97, %s100
      %p109 = scmp.eq.s32.totalorder %s28, 3
      %p110 = por %p108, %p109
      %p111 = scmp.ne.s32.totalorder %s100, %s101
      %p112 = scmp.eq.s32.totalorder %s28, 0
      %p113 = por %p111, %p112
      %p114 = scmp.ne.s32.totalorder %s100, %s101
      %p115 = scmp.eq.s32.totalorder %s29, 3
      %p116 = por %p114, %p115
      %p118 = scmp.ne.s32.totalorder %s101, %s117
      %p119 = scmp.eq.s32.totalorder %s29, 0
      %p120 = por %p118, %p119
      %s121 = ssub.s32 %s30, %s42
      %s122 = ssub.s32 %s31, %s38
      %s123 = sor.u32 %s121, %s122
      %p124 = scmp.eq.s32.totalorder %s123, 0
      %s126 = sadd.s32 %s125, 1
      %s127 = scalar_select %p124, %s125, %s126
      %p130 = pneg %p124
      %p131 = scmp.eq.s32.totalorder %s23, 3
      %p132 = por %p130, %p131
      %p133 = scmp.ne.s32.totalorder %s125, %s128
      %p134 = scmp.eq.s32.totalorder %s23, 0
      %p135 = por %p133, %p134
      %p136 = scmp.ne.s32.totalorder %s125, %s128
      %p137 = scmp.eq.s32.totalorder %s28, 3
      %p138 = por %p136, %p137
      %p139 = scmp.ne.s32.totalorder %s128, %s129
      %p140 = scmp.eq.s32.totalorder %s28, 0
      %p141 = por %p139, %p140
      %p142 = scmp.ne.s32.totalorder %s128, %s129
      %p143 = scmp.eq.s32.totalorder %s29, 3
      %p144 = por %p142, %p143
      %p146 = scmp.ne.s32.totalorder %s129, %s145
      %p147 = scmp.eq.s32.totalorder %s29, 0
      %p148 = por %p146, %p147
      %s149 = ssub.s32 %s30, %s42
      %s150 = ssub.s32 %s31, %s38
      %s151 = sor.u32 %s149, %s150
      %p152 = scmp.eq.s32.totalorder %s151, 0
      %s154 = sadd.s32 %s153, 1
      %s155 = scalar_select %p152, %s153, %s154
      %p158 = pneg %p152
      %p159 = scmp.eq.s32.totalorder %s23, 3
      %p160 = por %p158, %p159
      %p161 = scmp.ne.s32.totalorder %s153, %s156
      %p162 = scmp.eq.s32.totalorder %s23, 0
      %p163 = por %p161, %p162
      %p164 = scmp.ne.s32.totalorder %s153, %s156
      %p165 = scmp.eq.s32.totalorder %s28, 3
      %p166 = por %p164, %p165
      %p167 = scmp.ne.s32.totalorder %s156, %s157
      %p168 = scmp.eq.s32.totalorder %s28, 0
      %p169 = por %p167, %p168
      %p170 = scmp.ne.s32.totalorder %s156, %s157
      %p171 = scmp.eq.s32.totalorder %s29, 3
      %p172 = por %p170, %p171
      %p174 = scmp.ne.s32.totalorder %s157, %s173
      %p175 = scmp.eq.s32.totalorder %s29, 0
      %p176 = por %p174, %p175
      %p177 = scmp.le.s32.totalorder 1, %s23
      %p178 = scmp.lt.s32.totalorder %s23, 5
      %p179 = pnand %p177, %p178
      %p180 = pneg %p179
      // Predicated region
      $region9: #{tpu_custom_call.1} parent=5 // pred_check
        _
      $region10: #{tpu_custom_call.1} parent=5 // pred_check_branch
        %182 = sbr.rel (%p179) target = $region12
      $region11: #{tpu_custom_call.1} parent=5 // pred_region
        %s183 = ssub.s32 %s23, 1
      $region12: #{tpu_custom_call.1} parent=5 // pred_fallthru
        _
      %p184 = scmp.lt.s32.totalorder %s23, 4
      // Predicated region
      $region13: #{tpu_custom_call.1} parent=5 // pred_check
        %p185 = pneg %p184
      $region14: #{tpu_custom_call.1} parent=5 // pred_check_branch
        %187 = sbr.rel (%p185) target = $region16
      $region15: #{tpu_custom_call.1} parent=5 // pred_region
        // Predicated region
        $region17: #{tpu_custom_call.1} parent=15 // pred_check
          %p188 = pneg %p55
        $region18: #{tpu_custom_call.1} parent=15 // pred_check_branch
          %190 = sbr.rel (%p188) target = $region20
        $region19: #{tpu_custom_call.1} parent=15 // pred_region
          %s191 = sand.u32 %s45, 1
          %s192 = scalar_lea.sflag [#allocation3], %s191
          %s193 = sand.u32 %s45, 1
          %s194 = smul.addr %s193, 128
          %s195 = scalar_lea.vmem [#allocation2], %s194
          %s196 = smul.u32 32, %s30
          %198 = vsyncadd %s192, 0
          %s199 = smul.addr %s196, 4
          %s200 = scalar_lea.hbm %s0, %s199
          %s201 = sshll.u32 %s200, 4
          %s202 = int_to_ptr.hbm [resolvable:$true] %s201
          %s203 = sshll.u32 %s195, 4
          %s204 = int_to_ptr.vmem [resolvable:$true] %s203
          %209 = dma.hbm_to_vmem [thread:$0]  %s202, 2048, %s204, %s192, 64, 64, 4
        $region20: #{tpu_custom_call.1} parent=15 // pred_fallthru
          _
        // Predicated region
        $region21: #{tpu_custom_call.1} parent=15 // pred_check
          %p210 = pneg %p81
        $region22: #{tpu_custom_call.1} parent=15 // pred_check_branch
          %212 = sbr.rel (%p210) target = $region24
        $region23: #{tpu_custom_call.1} parent=15 // pred_region
          %s213 = sand.u32 %s23, 1
          %s214 = scalar_lea.sflag [#allocation6], %s213
          %s215 = sand.u32 %s71, 1
          %s216 = smul.addr %s215, 128
          %s217 = scalar_lea.vmem [#allocation5], %s216
          %s218 = smul.u32 32, %s31
          %220 = vsyncadd %s214, 0
          %s221 = smul.addr %s218, 4
          %s222 = scalar_lea.hbm %s1, %s221
          %s223 = sshll.u32 %s222, 4
          %s224 = int_to_ptr.hbm [resolvable:$true] %s223
          %s225 = sshll.u32 %s217, 4
          %s226 = int_to_ptr.vmem [resolvable:$true] %s225
          %231 = dma.hbm_to_vmem [thread:$0]  %s224, 2048, %s226, %s214, 64, 64, 4
        $region24: #{tpu_custom_call.1} parent=15 // pred_fallthru
          _
        // Predicated region
        $region25: #{tpu_custom_call.1} parent=15 // pred_check
          %p232 = pneg %p107
        $region26: #{tpu_custom_call.1} parent=15 // pred_check_branch
          %234 = sbr.rel (%p232) target = $region28
        $region27: #{tpu_custom_call.1} parent=15 // pred_region
          %s235 = sand.u32 %s23, 1
          %s236 = scalar_lea.sflag [#allocation6], %s235
          %s237 = sand.u32 %s97, 1
          %s238 = smul.addr %s237, 128
          %s239 = scalar_lea.vmem [#allocation7], %s238
          %s240 = smul.u32 32, %s31
          %242 = vsyncadd %s236, 0
          %s243 = smul.addr %s240, 4
          %s244 = scalar_lea.hbm %s2, %s243
          %s245 = sshll.u32 %s244, 4
          %s246 = int_to_ptr.hbm [resolvable:$true] %s245
          %s247 = sshll.u32 %s239, 4
          %s248 = int_to_ptr.vmem [resolvable:$true] %s247
          %253 = dma.hbm_to_vmem [thread:$0]  %s246, 2048, %s248, %s236, 64, 64, 4
        $region28: #{tpu_custom_call.1} parent=15 // pred_fallthru
          _
      $region16: #{tpu_custom_call.1} parent=5 // pred_fallthru
        _
      %p254 = scmp.le.s32.totalorder 1, %s23
      %p255 = scmp.lt.s32.totalorder %s23, 5
      %p256 = pnand %p254, %p255
      %p257 = pneg %p256
      // Predicated region
      $region29: #{tpu_custom_call.1} parent=5 // pred_check
        _
      $region30: #{tpu_custom_call.1} parent=5 // pred_check_branch
        %259 = sbr.rel (%p256) target = $region32
      $region31: #{tpu_custom_call.1} parent=5 // pred_region
        %s260 = ssub.s32 %s23, 1
        %s261 = sand.u32 %s48, 1
        %s262 = scalar_lea.sflag [#allocation3], %s261
        %s263 = sand.u32 %s48, 1
        %s264 = smul.addr %s263, 128
        %s265 = scalar_lea.vmem [#allocation2], %s264
        // Predicated region
        $region33: #{tpu_custom_call.1} parent=31 // pred_check
          %p266 = pneg %p61
        $region34: #{tpu_custom_call.1} parent=31 // pred_check_branch
          %268 = sbr.rel (%p266) target = $region36
        $region35: #{tpu_custom_call.1} parent=31 // pred_region
          %270 = dma.done %s262, 2048
        $region36: #{tpu_custom_call.1} parent=31 // pred_fallthru
          _
        %s271 = sand.u32 %s28, 1
        %s272 = scalar_lea.sflag [#allocation6], %s271
        %s273 = sand.u32 %s74, 1
        %s274 = smul.addr %s273, 128
        %s275 = scalar_lea.vmem [#allocation5], %s274
        // Predicated region
        $region37: #{tpu_custom_call.1} parent=31 // pred_check
          %p276 = pneg %p87
        $region38: #{tpu_custom_call.1} parent=31 // pred_check_branch
          %278 = sbr.rel (%p276) target = $region40
        $region39: #{tpu_custom_call.1} parent=31 // pred_region
          %280 = dma.done %s272, 2048
        $region40: #{tpu_custom_call.1} parent=31 // pred_fallthru
          _
        %s281 = sand.u32 %s28, 1
        %s282 = scalar_lea.sflag [#allocation6], %s281
        %s283 = sand.u32 %s100, 1
        %s284 = smul.addr %s283, 128
        %s285 = scalar_lea.vmem [#allocation7], %s284
        // Predicated region
        $region41: #{tpu_custom_call.1} parent=31 // pred_check
          %p286 = pneg %p113
        $region42: #{tpu_custom_call.1} parent=31 // pred_check_branch
          %288 = sbr.rel (%p286) target = $region44
        $region43: #{tpu_custom_call.1} parent=31 // pred_region
          %290 = dma.done %s282, 2048
        $region44: #{tpu_custom_call.1} parent=31 // pred_fallthru
          _
        %s291 = sand.u32 %s48, 1
        %s292 = scalar_lea.sflag [#allocation3], %s291
        %s293 = sand.u32 %s48, 1
        %s294 = smul.addr %s293, 128
        %s295 = scalar_lea.vmem [#allocation2], %s294
        %p296 = pneg %p61
        %p297 = pneg %p58
        %s298 = sand.u32 %s28, 1
        %s299 = scalar_lea.sflag [#allocation6], %s298
        %s300 = sand.u32 %s74, 1
        %s301 = smul.addr %s300, 128
        %s302 = scalar_lea.vmem [#allocation5], %s301
        %p303 = pneg %p87
        %p304 = pneg %p84
        %s305 = sand.u32 %s28, 1
        %s306 = scalar_lea.sflag [#allocation6], %s305
        %s307 = sand.u32 %s100, 1
        %s308 = smul.addr %s307, 128
        %s309 = scalar_lea.vmem [#allocation7], %s308
        %p310 = pneg %p113
        %p311 = pneg %p110
        %p312 = pneg %p141
        %p313 = pneg %p138
        %s314 = sand.u32 %s128, 1
        %s315 = scalar_lea.sflag [#allocation4], %s314
        %s316 = sand.u32 %s128, 1
        %s317 = smul.addr %s316, 256
        %s318 = scalar_lea.vmem [#allocation8], %s317
        %p319 = pneg %p169
        %p320 = pneg %p166
        %s321 = sand.u32 %s156, 1
        %s322 = scalar_lea.sflag [#allocation10], %s321
        %s323 = sand.u32 %s156, 1
        %s324 = smul.addr %s323, 256
        %s325 = scalar_lea.vmem [#allocation9], %s324
        %s326 = smul.u32 32, %s32
        %s327 = smul.u32 32, %s33
        %s328 = smul.u32 32, %s33
        %s329 = smul.u32 32, %s32
        %s330 = smul.u32 2, %s33
        %s331 = smul.u32 32, %s32
        %s332 = smul.u32 2, %s33
        %v333 = vld [vmem:[%s265] sm:$0xf]
        %v334 = vld [vmem:[%s265 + $0x4] sm:$0xf]
        %v335 = vld [vmem:[%s265 + $0x8] sm:$0xf]
        %v336 = vld [vmem:[%s265 + $0xc] sm:$0xf]
        %v337 = vld [vmem:[%s265 + $0x10] sm:$0xf]
        %v338 = vld [vmem:[%s265 + $0x14] sm:$0xf]
        %v339 = vld [vmem:[%s265 + $0x18] sm:$0xf]
        %v340 = vld [vmem:[%s265 + $0x1c] sm:$0xf]
        %v341 = vld [vmem:[%s265 + $0x20] sm:$0xf]
        %v342 = vld [vmem:[%s265 + $0x24] sm:$0xf]
        %v343 = vld [vmem:[%s265 + $0x28] sm:$0xf]
        %v344 = vld [vmem:[%s265 + $0x2c] sm:$0xf]
        %v345 = vld [vmem:[%s265 + $0x30] sm:$0xf]
        %v346 = vld [vmem:[%s265 + $0x34] sm:$0xf]
        %v347 = vld [vmem:[%s265 + $0x38] sm:$0xf]
        %v348 = vld [vmem:[%s265 + $0x3c] sm:$0xf]
        %v349 = vld [vmem:[%s265 + $0x40] sm:$0xf]
        %v350 = vld [vmem:[%s265 + $0x44] sm:$0xf]
        %v351 = vld [vmem:[%s265 + $0x48] sm:$0xf]
        %v352 = vld [vmem:[%s265 + $0x4c] sm:$0xf]
        %v353 = vld [vmem:[%s265 + $0x50] sm:$0xf]
        %v354 = vld [vmem:[%s265 + $0x54] sm:$0xf]
        %v355 = vld [vmem:[%s265 + $0x58] sm:$0xf]
        %v356 = vld [vmem:[%s265 + $0x5c] sm:$0xf]
        %v357 = vld [vmem:[%s265 + $0x60] sm:$0xf]
        %v358 = vld [vmem:[%s265 + $0x64] sm:$0xf]
        %v359 = vld [vmem:[%s265 + $0x68] sm:$0xf]
        %v360 = vld [vmem:[%s265 + $0x6c] sm:$0xf]
        %v361 = vld [vmem:[%s265 + $0x70] sm:$0xf]
        %v362 = vld [vmem:[%s265 + $0x74] sm:$0xf]
        %v363 = vld [vmem:[%s265 + $0x78] sm:$0xf]
        %v364 = vld [vmem:[%s265 + $0x7c] sm:$0xf]
        %v365 = vld [vmem:[%s275] sm:$0xf]
        %v366 = vld [vmem:[%s275 + $0x4] sm:$0xf]
        %v367 = vld [vmem:[%s275 + $0x8] sm:$0xf]
        %v368 = vld [vmem:[%s275 + $0xc] sm:$0xf]
        %v369 = vld [vmem:[%s275 + $0x10] sm:$0xf]
        %v370 = vld [vmem:[%s275 + $0x14] sm:$0xf]
        %v371 = vld [vmem:[%s275 + $0x18] sm:$0xf]
        %v372 = vld [vmem:[%s275 + $0x1c] sm:$0xf]
        %v373 = vld [vmem:[%s275 + $0x20] sm:$0xf]
        %v374 = vld [vmem:[%s275 + $0x24] sm:$0xf]
        %v375 = vld [vmem:[%s275 + $0x28] sm:$0xf]
        %v376 = vld [vmem:[%s275 + $0x2c] sm:$0xf]
        %v377 = vld [vmem:[%s275 + $0x30] sm:$0xf]
        %v378 = vld [vmem:[%s275 + $0x34] sm:$0xf]
        %v379 = vld [vmem:[%s275 + $0x38] sm:$0xf]
        %v380 = vld [vmem:[%s275 + $0x3c] sm:$0xf]
        %v381 = vld [vmem:[%s275 + $0x40] sm:$0xf]
        %v382 = vld [vmem:[%s275 + $0x44] sm:$0xf]
        %v383 = vld [vmem:[%s275 + $0x48] sm:$0xf]
        %v384 = vld [vmem:[%s275 + $0x4c] sm:$0xf]
        %v385 = vld [vmem:[%s275 + $0x50] sm:$0xf]
        %v386 = vld [vmem:[%s275 + $0x54] sm:$0xf]
        %v387 = vld [vmem:[%s275 + $0x58] sm:$0xf]
        %v388 = vld [vmem:[%s275 + $0x5c] sm:$0xf]
        %v389 = vld [vmem:[%s275 + $0x60] sm:$0xf]
        %v390 = vld [vmem:[%s275 + $0x64] sm:$0xf]
        %v391 = vld [vmem:[%s275 + $0x68] sm:$0xf]
        %v392 = vld [vmem:[%s275 + $0x6c] sm:$0xf]
        %v393 = vld [vmem:[%s275 + $0x70] sm:$0xf]
        %v394 = vld [vmem:[%s275 + $0x74] sm:$0xf]
        %v395 = vld [vmem:[%s275 + $0x78] sm:$0xf]
        %v396 = vld [vmem:[%s275 + $0x7c] sm:$0xf]
        %v429 = vunpack.c.l.b16 %v333
        %v430 = vunpack.c.l.b16 %v334
        %v431 = vunpack.c.l.b16 %v335
        %v432 = vunpack.c.l.b16 %v336
        %v433 = vunpack.c.l.b16 %v337
        %v434 = vunpack.c.l.b16 %v338
        %v435 = vunpack.c.l.b16 %v339
        %v436 = vunpack.c.l.b16 %v340
        %v437 = vunpack.c.l.b16 %v341
        %v438 = vunpack.c.l.b16 %v342
        %v439 = vunpack.c.l.b16 %v343
        %v440 = vunpack.c.l.b16 %v344
        %v441 = vunpack.c.l.b16 %v345
        %v442 = vunpack.c.l.b16 %v346
        %v443 = vunpack.c.l.b16 %v347
        %v444 = vunpack.c.l.b16 %v348
        %v445 = vunpack.c.l.b16 %v349
        %v446 = vunpack.c.l.b16 %v350
        %v447 = vunpack.c.l.b16 %v351
        %v448 = vunpack.c.l.b16 %v352
        %v449 = vunpack.c.l.b16 %v353
        %v450 = vunpack.c.l.b16 %v354
        %v451 = vunpack.c.l.b16 %v355
        %v452 = vunpack.c.l.b16 %v356
        %v453 = vunpack.c.l.b16 %v357
        %v454 = vunpack.c.l.b16 %v358
        %v455 = vunpack.c.l.b16 %v359
        %v456 = vunpack.c.l.b16 %v360
        %v457 = vunpack.c.l.b16 %v361
        %v458 = vunpack.c.l.b16 %v362
        %v459 = vunpack.c.l.b16 %v363
        %v460 = vunpack.c.l.b16 %v364
        %v461 = vpack.c.b16 %v430, %v429
        %v462 = vpack.c.b16 %v432, %v431
        %v463 = vpack.c.b16 %v434, %v433
        %v464 = vpack.c.b16 %v436, %v435
        %v465 = vpack.c.b16 %v438, %v437
        %v466 = vpack.c.b16 %v440, %v439
        %v467 = vpack.c.b16 %v442, %v441
        %v468 = vpack.c.b16 %v444, %v443
        %v469 = vpack.c.b16 %v446, %v445
        %v470 = vpack.c.b16 %v448, %v447
        %v471 = vpack.c.b16 %v450, %v449
        %v472 = vpack.c.b16 %v452, %v451
        %v473 = vpack.c.b16 %v454, %v453
        %v474 = vpack.c.b16 %v456, %v455
        %v475 = vpack.c.b16 %v458, %v457
        %v476 = vpack.c.b16 %v460, %v459
        %v525 = vunpack.c.l.b16 %v365
        %v526 = vunpack.c.l.b16 %v366
        %v527 = vunpack.c.l.b16 %v367
        %v528 = vunpack.c.l.b16 %v368
        %v529 = vunpack.c.l.b16 %v369
        %v530 = vunpack.c.l.b16 %v370
        %v531 = vunpack.c.l.b16 %v371
        %v532 = vunpack.c.l.b16 %v372
        %v533 = vunpack.c.l.b16 %v373
        %v534 = vunpack.c.l.b16 %v374
        %v535 = vunpack.c.l.b16 %v375
        %v536 = vunpack.c.l.b16 %v376
        %v537 = vunpack.c.l.b16 %v377
        %v538 = vunpack.c.l.b16 %v378
        %v539 = vunpack.c.l.b16 %v379
        %v540 = vunpack.c.l.b16 %v380
        %v541 = vunpack.c.l.b16 %v381
        %v542 = vunpack.c.l.b16 %v382
        %v543 = vunpack.c.l.b16 %v383
        %v544 = vunpack.c.l.b16 %v384
        %v545 = vunpack.c.l.b16 %v385
        %v546 = vunpack.c.l.b16 %v386
        %v547 = vunpack.c.l.b16 %v387
        %v548 = vunpack.c.l.b16 %v388
        %v549 = vunpack.c.l.b16 %v389
        %v550 = vunpack.c.l.b16 %v390
        %v551 = vunpack.c.l.b16 %v391
        %v552 = vunpack.c.l.b16 %v392
        %v553 = vunpack.c.l.b16 %v393
        %v554 = vunpack.c.l.b16 %v394
        %v555 = vunpack.c.l.b16 %v395
        %v556 = vunpack.c.l.b16 %v396
        %v557 = vpack.c.b16 %v526, %v525
        %v558 = vpack.c.b16 %v528, %v527
        %v559 = vpack.c.b16 %v530, %v529
        %v560 = vpack.c.b16 %v532, %v531
        %v561 = vpack.c.b16 %v534, %v533
        %v562 = vpack.c.b16 %v536, %v535
        %v563 = vpack.c.b16 %v538, %v537
        %v564 = vpack.c.b16 %v540, %v539
        %v565 = vpack.c.b16 %v542, %v541
        %v566 = vpack.c.b16 %v544, %v543
        %v567 = vpack.c.b16 %v546, %v545
        %v568 = vpack.c.b16 %v548, %v547
        %v569 = vpack.c.b16 %v550, %v549
        %v570 = vpack.c.b16 %v552, %v551
        %v571 = vpack.c.b16 %v554, %v553
        %v572 = vpack.c.b16 %v556, %v555
        %589 = vmatpush.bf16.xpose.msra.mxu0 %v564
        %590 = vmatpush.bf16.xpose.msra.mxu0 %v563
        %591 = vmatpush.bf16.xpose.msra.mxu0 %v562
        %592 = vmatpush.bf16.xpose.msra.mxu0 %v561
        %593 = vmatpush.bf16.xpose.msra.mxu0 %v560
        %594 = vmatpush.bf16.xpose.msra.mxu0 %v559
        %595 = vmatpush.bf16.xpose.msra.mxu0 %v558
        %596 = vmatpush.bf16.xpose.msra.mxu0 %v557
        %597 = vmatmul.bf16.gmra.mxu0 %v461
        %v598 = vpop.f32.mrf.mxu0
        %v599 = vadd.f32 0.0, %v598
        %v600 = vpop.f32.mrf.mxu0
        %v601 = vadd.f32 0.0, %v600
        %602 = vmatmul.bf16.gmra.mxu0 %v462
        %v603 = vpop.f32.mrf.mxu0
        %v604 = vadd.f32 0.0, %v603
        %v605 = vpop.f32.mrf.mxu0
        %v606 = vadd.f32 0.0, %v605
        %607 = vmatmul.bf16.gmra.mxu0 %v463
        %v608 = vpop.f32.mrf.mxu0
        %v609 = vadd.f32 0.0, %v608
        %v610 = vpop.f32.mrf.mxu0
        %v611 = vadd.f32 0.0, %v610
        %612 = vmatmul.bf16.gmra.mxu0 %v464
        %v613 = vpop.f32.mrf.mxu0
        %v614 = vadd.f32 0.0, %v613
        %v615 = vpop.f32.mrf.mxu0
        %v616 = vadd.f32 0.0, %v615
        %617 = vmatmul.bf16.gmra.mxu0 %v465
        %v618 = vpop.f32.mrf.mxu0
        %v619 = vadd.f32 0.0, %v618
        %v620 = vpop.f32.mrf.mxu0
        %v621 = vadd.f32 0.0, %v620
        %622 = vmatmul.bf16.gmra.mxu0 %v466
        %v623 = vpop.f32.mrf.mxu0
        %v624 = vadd.f32 0.0, %v623
        %v625 = vpop.f32.mrf.mxu0
        %v626 = vadd.f32 0.0, %v625
        %627 = vmatmul.bf16.gmra.mxu0 %v467
        %v628 = vpop.f32.mrf.mxu0
        %v629 = vadd.f32 0.0, %v628
        %v630 = vpop.f32.mrf.mxu0
        %v631 = vadd.f32 0.0, %v630
        %632 = vmatmul.bf16.gmra.mxu0 %v468
        %v633 = vpop.f32.mrf.mxu0
        %v634 = vadd.f32 0.0, %v633
        %v635 = vpop.f32.mrf.mxu0
        %v636 = vadd.f32 0.0, %v635
        %637 = vmatmul.bf16.gmra.mxu0 %v469
        %v638 = vpop.f32.mrf.mxu0
        %v639 = vadd.f32 0.0, %v638
        %v640 = vpop.f32.mrf.mxu0
        %v641 = vadd.f32 0.0, %v640
        %642 = vmatmul.bf16.gmra.mxu0 %v470
        %v643 = vpop.f32.mrf.mxu0
        %v644 = vadd.f32 0.0, %v643
        %v645 = vpop.f32.mrf.mxu0
        %v646 = vadd.f32 0.0, %v645
        %647 = vmatmul.bf16.gmra.mxu0 %v471
        %v648 = vpop.f32.mrf.mxu0
        %v649 = vadd.f32 0.0, %v648
        %v650 = vpop.f32.mrf.mxu0
        %v651 = vadd.f32 0.0, %v650
        %652 = vmatmul.bf16.gmra.mxu0 %v472
        %v653 = vpop.f32.mrf.mxu0
        %v654 = vadd.f32 0.0, %v653
        %v655 = vpop.f32.mrf.mxu0
        %v656 = vadd.f32 0.0, %v655
        %657 = vmatmul.bf16.gmra.mxu0 %v473
        %v658 = vpop.f32.mrf.mxu0
        %v659 = vadd.f32 0.0, %v658
        %v660 = vpop.f32.mrf.mxu0
        %v661 = vadd.f32 0.0, %v660
        %662 = vmatmul.bf16.gmra.mxu0 %v474
        %v663 = vpop.f32.mrf.mxu0
        %v664 = vadd.f32 0.0, %v663
        %v665 = vpop.f32.mrf.mxu0
        %v666 = vadd.f32 0.0, %v665
        %667 = vmatmul.bf16.gmra.mxu0 %v475
        %v668 = vpop.f32.mrf.mxu0
        %v669 = vadd.f32 0.0, %v668
        %v670 = vpop.f32.mrf.mxu0
        %v671 = vadd.f32 0.0, %v670
        %672 = vmatmul.bf16.gmra.mxu0 %v476
        %v673 = vpop.f32.mrf.mxu0
        %v674 = vadd.f32 0.0, %v673
        %v675 = vpop.f32.mrf.mxu0
        %v676 = vadd.f32 0.0, %v675
        %677 = vdwg.mxu0
        %678 = vmatpush.bf16.xpose.msra.mxu0 %v572
        %679 = vmatpush.bf16.xpose.msra.mxu0 %v571
        %680 = vmatpush.bf16.xpose.msra.mxu0 %v570
        %681 = vmatpush.bf16.xpose.msra.mxu0 %v569
        %682 = vmatpush.bf16.xpose.msra.mxu0 %v568
        %683 = vmatpush.bf16.xpose.msra.mxu0 %v567
        %684 = vmatpush.bf16.xpose.msra.mxu0 %v566
        %685 = vmatpush.bf16.xpose.msra.mxu0 %v565
        %686 = vmatmul.bf16.gmra.mxu0 %v461
        %v687 = vpop.f32.mrf.mxu0
        %v688 = vadd.f32 0.0, %v687
        %v689 = vpop.f32.mrf.mxu0
        %v690 = vadd.f32 0.0, %v689
        %691 = vmatmul.bf16.gmra.mxu0 %v462
        %v692 = vpop.f32.mrf.mxu0
        %v693 = vadd.f32 0.0, %v692
        %v694 = vpop.f32.mrf.mxu0
        %v695 = vadd.f32 0.0, %v694
        %696 = vmatmul.bf16.gmra.mxu0 %v463
        %v697 = vpop.f32.mrf.mxu0
        %v698 = vadd.f32 0.0, %v697
        %v699 = vpop.f32.mrf.mxu0
        %v700 = vadd.f32 0.0, %v699
        %701 = vmatmul.bf16.gmra.mxu0 %v464
        %v702 = vpop.f32.mrf.mxu0
        %v703 = vadd.f32 0.0, %v702
        %v704 = vpop.f32.mrf.mxu0
        %v705 = vadd.f32 0.0, %v704
        %706 = vmatmul.bf16.gmra.mxu0 %v465
        %v707 = vpop.f32.mrf.mxu0
        %v708 = vadd.f32 0.0, %v707
        %v709 = vpop.f32.mrf.mxu0
        %v710 = vadd.f32 0.0, %v709
        %711 = vmatmul.bf16.gmra.mxu0 %v466
        %v712 = vpop.f32.mrf.mxu0
        %v713 = vadd.f32 0.0, %v712
        %v714 = vpop.f32.mrf.mxu0
        %v715 = vadd.f32 0.0, %v714
        %716 = vmatmul.bf16.gmra.mxu0 %v467
        %v717 = vpop.f32.mrf.mxu0
        %v718 = vadd.f32 0.0, %v717
        %v719 = vpop.f32.mrf.mxu0
        %v720 = vadd.f32 0.0, %v719
        %721 = vmatmul.bf16.gmra.mxu0 %v468
        %v722 = vpop.f32.mrf.mxu0
        %v723 = vadd.f32 0.0, %v722
        %v724 = vpop.f32.mrf.mxu0
        %v725 = vadd.f32 0.0, %v724
        %726 = vmatmul.bf16.gmra.mxu0 %v469
        %v727 = vpop.f32.mrf.mxu0
        %v728 = vadd.f32 0.0, %v727
        %v729 = vpop.f32.mrf.mxu0
        %v730 = vadd.f32 0.0, %v729
        %731 = vmatmul.bf16.gmra.mxu0 %v470
        %v732 = vpop.f32.mrf.mxu0
        %v733 = vadd.f32 0.0, %v732
        %v734 = vpop.f32.mrf.mxu0
        %v735 = vadd.f32 0.0, %v734
        %736 = vmatmul.bf16.gmra.mxu0 %v471
        %v737 = vpop.f32.mrf.mxu0
        %v738 = vadd.f32 0.0, %v737
        %v739 = vpop.f32.mrf.mxu0
        %v740 = vadd.f32 0.0, %v739
        %741 = vmatmul.bf16.gmra.mxu0 %v472
        %v742 = vpop.f32.mrf.mxu0
        %v743 = vadd.f32 0.0, %v742
        %v744 = vpop.f32.mrf.mxu0
        %v745 = vadd.f32 0.0, %v744
        %746 = vmatmul.bf16.gmra.mxu0 %v473
        %v747 = vpop.f32.mrf.mxu0
        %v748 = vadd.f32 0.0, %v747
        %v749 = vpop.f32.mrf.mxu0
        %v750 = vadd.f32 0.0, %v749
        %751 = vmatmul.bf16.gmra.mxu0 %v474
        %v752 = vpop.f32.mrf.mxu0
        %v753 = vadd.f32 0.0, %v752
        %v754 = vpop.f32.mrf.mxu0
        %v755 = vadd.f32 0.0, %v754
        %756 = vmatmul.bf16.gmra.mxu0 %v475
        %v757 = vpop.f32.mrf.mxu0
        %v758 = vadd.f32 0.0, %v757
        %v759 = vpop.f32.mrf.mxu0
        %v760 = vadd.f32 0.0, %v759
        %761 = vmatmul.bf16.gmra.mxu0 %v476
        %v762 = vpop.f32.mrf.mxu0
        %v763 = vadd.f32 0.0, %v762
        %v764 = vpop.f32.mrf.mxu0
        %v765 = vadd.f32 0.0, %v764
        %766 = vdwg.mxu0
        %v767 = vsub.f32 0.0, %v599
        %v768 = vsub.f32 0.0, %v688
        %v769 = vsub.f32 0.0, %v601
        %v770 = vsub.f32 0.0, %v690
        %v771 = vsub.f32 0.0, %v604
        %v772 = vsub.f32 0.0, %v693
        %v773 = vsub.f32 0.0, %v606
        %v774 = vsub.f32 0.0, %v695
        %v775 = vsub.f32 0.0, %v609
        %v776 = vsub.f32 0.0, %v698
        %v777 = vsub.f32 0.0, %v611
        %v778 = vsub.f32 0.0, %v700
        %v779 = vsub.f32 0.0, %v614
        %v780 = vsub.f32 0.0, %v703
        %v781 = vsub.f32 0.0, %v616
        %v782 = vsub.f32 0.0, %v705
        %v783 = vsub.f32 0.0, %v619
        %v784 = vsub.f32 0.0, %v708
        %v785 = vsub.f32 0.0, %v621
        %v786 = vsub.f32 0.0, %v710
        %v787 = vsub.f32 0.0, %v624
        %v788 = vsub.f32 0.0, %v713
        %v789 = vsub.f32 0.0, %v626
        %v790 = vsub.f32 0.0, %v715
        %v791 = vsub.f32 0.0, %v629
        %v792 = vsub.f32 0.0, %v718
        %v793 = vsub.f32 0.0, %v631
        %v794 = vsub.f32 0.0, %v720
        %v795 = vsub.f32 0.0, %v634
        %v796 = vsub.f32 0.0, %v723
        %v797 = vsub.f32 0.0, %v636
        %v798 = vsub.f32 0.0, %v725
        %v799 = vsub.f32 0.0, %v639
        %v800 = vsub.f32 0.0, %v728
        %v801 = vsub.f32 0.0, %v641
        %v802 = vsub.f32 0.0, %v730
        %v803 = vsub.f32 0.0, %v644
        %v804 = vsub.f32 0.0, %v733
        %v805 = vsub.f32 0.0, %v646
        %v806 = vsub.f32 0.0, %v735
        %v807 = vsub.f32 0.0, %v649
        %v808 = vsub.f32 0.0, %v738
        %v809 = vsub.f32 0.0, %v651
        %v810 = vsub.f32 0.0, %v740
        %v811 = vsub.f32 0.0, %v654
        %v812 = vsub.f32 0.0, %v743
        %v813 = vsub.f32 0.0, %v656
        %v814 = vsub.f32 0.0, %v745
        %v815 = vsub.f32 0.0, %v659
        %v816 = vsub.f32 0.0, %v748
        %v817 = vsub.f32 0.0, %v661
        %v818 = vsub.f32 0.0, %v750
        %v819 = vsub.f32 0.0, %v664
        %v820 = vsub.f32 0.0, %v753
        %v821 = vsub.f32 0.0, %v666
        %v822 = vsub.f32 0.0, %v755
        %v823 = vsub.f32 0.0, %v669
        %v824 = vsub.f32 0.0, %v758
        %v825 = vsub.f32 0.0, %v671
        %v826 = vsub.f32 0.0, %v760
        %v827 = vsub.f32 0.0, %v674
        %v828 = vsub.f32 0.0, %v763
        %v829 = vsub.f32 0.0, %v676
        %v830 = vsub.f32 0.0, %v765
        %v831 = vmul.f32 %v767, 1.442695
        %v832 = vpow.pop %v831
        %v833 = vmul.f32 %v768, 1.442695
        %v834 = vpow.pop %v833
        %v835 = vmul.f32 %v769, 1.442695
        %v836 = vpow.pop %v835
        %v837 = vmul.f32 %v770, 1.442695
        %v838 = vpow.pop %v837
        %v839 = vmul.f32 %v771, 1.442695
        %v840 = vpow.pop %v839
        %v841 = vmul.f32 %v772, 1.442695
        %v842 = vpow.pop %v841
        %v843 = vmul.f32 %v773, 1.442695
        %v844 = vpow.pop %v843
        %v845 = vmul.f32 %v774, 1.442695
        %v846 = vpow.pop %v845
        %v847 = vmul.f32 %v775, 1.442695
        %v848 = vpow.pop %v847
        %v849 = vmul.f32 %v776, 1.442695
        %v850 = vpow.pop %v849
        %v851 = vmul.f32 %v777, 1.442695
        %v852 = vpow.pop %v851
        %v853 = vmul.f32 %v778, 1.442695
        %v854 = vpow.pop %v853
        %v855 = vmul.f32 %v779, 1.442695
        %v856 = vpow.pop %v855
        %v857 = vmul.f32 %v780, 1.442695
        %v858 = vpow.pop %v857
        %v859 = vmul.f32 %v781, 1.442695
        %v860 = vpow.pop %v859
        %v861 = vmul.f32 %v782, 1.442695
        %v862 = vpow.pop %v861
        %v863 = vmul.f32 %v783, 1.442695
        %v864 = vpow.pop %v863
        %v865 = vmul.f32 %v784, 1.442695
        %v866 = vpow.pop %v865
        %v867 = vmul.f32 %v785, 1.442695
        %v868 = vpow.pop %v867
        %v869 = vmul.f32 %v786, 1.442695
        %v870 = vpow.pop %v869
        %v871 = vmul.f32 %v787, 1.442695
        %v872 = vpow.pop %v871
        %v873 = vmul.f32 %v788, 1.442695
        %v874 = vpow.pop %v873
        %v875 = vmul.f32 %v789, 1.442695
        %v876 = vpow.pop %v875
        %v877 = vmul.f32 %v790, 1.442695
        %v878 = vpow.pop %v877
        %v879 = vmul.f32 %v791, 1.442695
        %v880 = vpow.pop %v879
        %v881 = vmul.f32 %v792, 1.442695
        %v882 = vpow.pop %v881
        %v883 = vmul.f32 %v793, 1.442695
        %v884 = vpow.pop %v883
        %v885 = vmul.f32 %v794, 1.442695
        %v886 = vpow.pop %v885
        %v887 = vmul.f32 %v795, 1.442695
        %v888 = vpow.pop %v887
        %v889 = vmul.f32 %v796, 1.442695
        %v890 = vpow.pop %v889
        %v891 = vmul.f32 %v797, 1.442695
        %v892 = vpow.pop %v891
        %v893 = vmul.f32 %v798, 1.442695
        %v894 = vpow.pop %v893
        %v895 = vmul.f32 %v799, 1.442695
        %v896 = vpow.pop %v895
        %v897 = vmul.f32 %v800, 1.442695
        %v898 = vpow.pop %v897
        %v899 = vmul.f32 %v801, 1.442695
        %v900 = vpow.pop %v899
        %v901 = vmul.f32 %v802, 1.442695
        %v902 = vpow.pop %v901
        %v903 = vmul.f32 %v803, 1.442695
        %v904 = vpow.pop %v903
        %v905 = vmul.f32 %v804, 1.442695
        %v906 = vpow.pop %v905
        %v907 = vmul.f32 %v805, 1.442695
        %v908 = vpow.pop %v907
        %v909 = vmul.f32 %v806, 1.442695
        %v910 = vpow.pop %v909
        %v911 = vmul.f32 %v807, 1.442695
        %v912 = vpow.pop %v911
        %v913 = vmul.f32 %v808, 1.442695
        %v914 = vpow.pop %v913
        %v915 = vmul.f32 %v809, 1.442695
        %v916 = vpow.pop %v915
        %v917 = vmul.f32 %v810, 1.442695
        %v918 = vpow.pop %v917
        %v919 = vmul.f32 %v811, 1.442695
        %v920 = vpow.pop %v919
        %v921 = vmul.f32 %v812, 1.442695
        %v922 = vpow.pop %v921
        %v923 = vmul.f32 %v813, 1.442695
        %v924 = vpow.pop %v923
        %v925 = vmul.f32 %v814, 1.442695
        %v926 = vpow.pop %v925
        %v927 = vmul.f32 %v815, 1.442695
        %v928 = vpow.pop %v927
        %v929 = vmul.f32 %v816, 1.442695
        %v930 = vpow.pop %v929
        %v931 = vmul.f32 %v817, 1.442695
        %v932 = vpow.pop %v931
        %v933 = vmul.f32 %v818, 1.442695
        %v934 = vpow.pop %v933
        %v935 = vmul.f32 %v819, 1.442695
        %v936 = vpow.pop %v935
        %v937 = vmul.f32 %v820, 1.442695
        %v938 = vpow.pop %v937
        %v939 = vmul.f32 %v821, 1.442695
        %v940 = vpow.pop %v939
        %v941 = vmul.f32 %v822, 1.442695
        %v942 = vpow.pop %v941
        %v943 = vmul.f32 %v823, 1.442695
        %v944 = vpow.pop %v943
        %v945 = vmul.f32 %v824, 1.442695
        %v946 = vpow.pop %v945
        %v947 = vmul.f32 %v825, 1.442695
        %v948 = vpow.pop %v947
        %v949 = vmul.f32 %v826, 1.442695
        %v950 = vpow.pop %v949
        %v951 = vmul.f32 %v827, 1.442695
        %v952 = vpow.pop %v951
        %v953 = vmul.f32 %v828, 1.442695
        %v954 = vpow.pop %v953
        %v955 = vmul.f32 %v829, 1.442695
        %v956 = vpow.pop %v955
        %v957 = vmul.f32 %v830, 1.442695
        %v958 = vpow.pop %v957
        %v959 = vadd.f32 %v832, 1.0
        %v960 = vadd.f32 %v834, 1.0
        %v961 = vadd.f32 %v836, 1.0
        %v962 = vadd.f32 %v838, 1.0
        %v963 = vadd.f32 %v840, 1.0
        %v964 = vadd.f32 %v842, 1.0
        %v965 = vadd.f32 %v844, 1.0
        %v966 = vadd.f32 %v846, 1.0
        %v967 = vadd.f32 %v848, 1.0
        %v968 = vadd.f32 %v850, 1.0
        %v969 = vadd.f32 %v852, 1.0
        %v970 = vadd.f32 %v854, 1.0
        %v971 = vadd.f32 %v856, 1.0
        %v972 = vadd.f32 %v858, 1.0
        %v973 = vadd.f32 %v860, 1.0
        %v974 = vadd.f32 %v862, 1.0
        %v975 = vadd.f32 %v864, 1.0
        %v976 = vadd.f32 %v866, 1.0
        %v977 = vadd.f32 %v868, 1.0
        %v978 = vadd.f32 %v870, 1.0
        %v979 = vadd.f32 %v872, 1.0
        %v980 = vadd.f32 %v874, 1.0
        %v981 = vadd.f32 %v876, 1.0
        %v982 = vadd.f32 %v878, 1.0
        %v983 = vadd.f32 %v880, 1.0
        %v984 = vadd.f32 %v882, 1.0
        %v985 = vadd.f32 %v884, 1.0
        %v986 = vadd.f32 %v886, 1.0
        %v987 = vadd.f32 %v888, 1.0
        %v988 = vadd.f32 %v890, 1.0
        %v989 = vadd.f32 %v892, 1.0
        %v990 = vadd.f32 %v894, 1.0
        %v991 = vadd.f32 %v896, 1.0
        %v992 = vadd.f32 %v898, 1.0
        %v993 = vadd.f32 %v900, 1.0
        %v994 = vadd.f32 %v902, 1.0
        %v995 = vadd.f32 %v904, 1.0
        %v996 = vadd.f32 %v906, 1.0
        %v997 = vadd.f32 %v908, 1.0
        %v998 = vadd.f32 %v910, 1.0
        %v999 = vadd.f32 %v912, 1.0
        %v1000 = vadd.f32 %v914, 1.0
        %v1001 = vadd.f32 %v916, 1.0
        %v1002 = vadd.f32 %v918, 1.0
        %v1003 = vadd.f32 %v920, 1.0
        %v1004 = vadd.f32 %v922, 1.0
        %v1005 = vadd.f32 %v924, 1.0
        %v1006 = vadd.f32 %v926, 1.0
        %v1007 = vadd.f32 %v928, 1.0
        %v1008 = vadd.f32 %v930, 1.0
        %v1009 = vadd.f32 %v932, 1.0
        %v1010 = vadd.f32 %v934, 1.0
        %v1011 = vadd.f32 %v936, 1.0
        %v1012 = vadd.f32 %v938, 1.0
        %v1013 = vadd.f32 %v940, 1.0
        %v1014 = vadd.f32 %v942, 1.0
        %v1015 = vadd.f32 %v944, 1.0
        %v1016 = vadd.f32 %v946, 1.0
        %v1017 = vadd.f32 %v948, 1.0
        %v1018 = vadd.f32 %v950, 1.0
        %v1019 = vadd.f32 %v952, 1.0
        %v1020 = vadd.f32 %v954, 1.0
        %v1021 = vadd.f32 %v956, 1.0
        %v1022 = vadd.f32 %v958, 1.0
        %v1023 = vrcp.pop %v959
        %v1024 = vrcp.pop %v960
        %v1025 = vrcp.pop %v961
        %v1026 = vrcp.pop %v962
        %v1027 = vrcp.pop %v963
        %v1028 = vrcp.pop %v964
        %v1029 = vrcp.pop %v965
        %v1030 = vrcp.pop %v966
        %v1031 = vrcp.pop %v967
        %v1032 = vrcp.pop %v968
        %v1033 = vrcp.pop %v969
        %v1034 = vrcp.pop %v970
        %v1035 = vrcp.pop %v971
        %v1036 = vrcp.pop %v972
        %v1037 = vrcp.pop %v973
        %v1038 = vrcp.pop %v974
        %v1039 = vrcp.pop %v975
        %v1040 = vrcp.pop %v976
        %v1041 = vrcp.pop %v977
        %v1042 = vrcp.pop %v978
        %v1043 = vrcp.pop %v979
        %v1044 = vrcp.pop %v980
        %v1045 = vrcp.pop %v981
        %v1046 = vrcp.pop %v982
        %v1047 = vrcp.pop %v983
        %v1048 = vrcp.pop %v984
        %v1049 = vrcp.pop %v985
        %v1050 = vrcp.pop %v986
        %v1051 = vrcp.pop %v987
        %v1052 = vrcp.pop %v988
        %v1053 = vrcp.pop %v989
        %v1054 = vrcp.pop %v990
        %v1055 = vrcp.pop %v991
        %v1056 = vrcp.pop %v992
        %v1057 = vrcp.pop %v993
        %v1058 = vrcp.pop %v994
        %v1059 = vrcp.pop %v995
        %v1060 = vrcp.pop %v996
        %v1061 = vrcp.pop %v997
        %v1062 = vrcp.pop %v998
        %v1063 = vrcp.pop %v999
        %v1064 = vrcp.pop %v1000
        %v1065 = vrcp.pop %v1001
        %v1066 = vrcp.pop %v1002
        %v1067 = vrcp.pop %v1003
        %v1068 = vrcp.pop %v1004
        %v1069 = vrcp.pop %v1005
        %v1070 = vrcp.pop %v1006
        %v1071 = vrcp.pop %v1007
        %v1072 = vrcp.pop %v1008
        %v1073 = vrcp.pop %v1009
        %v1074 = vrcp.pop %v1010
        %v1075 = vrcp.pop %v1011
        %v1076 = vrcp.pop %v1012
        %v1077 = vrcp.pop %v1013
        %v1078 = vrcp.pop %v1014
        %v1079 = vrcp.pop %v1015
        %v1080 = vrcp.pop %v1016
        %v1081 = vrcp.pop %v1017
        %v1082 = vrcp.pop %v1018
        %v1083 = vrcp.pop %v1019
        %v1084 = vrcp.pop %v1020
        %v1085 = vrcp.pop %v1021
        %v1086 = vrcp.pop %v1022
        %v1087 = vpack.c.bf16 %v1024, %v1023
        %v1088 = vpack.c.bf16 %v1026, %v1025
        %v1089 = vpack.c.bf16 %v1028, %v1027
        %v1090 = vpack.c.bf16 %v1030, %v1029
        %v1091 = vpack.c.bf16 %v1032, %v1031
        %v1092 = vpack.c.bf16 %v1034, %v1033
        %v1093 = vpack.c.bf16 %v1036, %v1035
        %v1094 = vpack.c.bf16 %v1038, %v1037
        %v1095 = vpack.c.bf16 %v1040, %v1039
        %v1096 = vpack.c.bf16 %v1042, %v1041
        %v1097 = vpack.c.bf16 %v1044, %v1043
        %v1098 = vpack.c.bf16 %v1046, %v1045
        %v1099 = vpack.c.bf16 %v1048, %v1047
        %v1100 = vpack.c.bf16 %v1050, %v1049
        %v1101 = vpack.c.bf16 %v1052, %v1051
        %v1102 = vpack.c.bf16 %v1054, %v1053
        %v1103 = vpack.c.bf16 %v1056, %v1055
        %v1104 = vpack.c.bf16 %v1058, %v1057
        %v1105 = vpack.c.bf16 %v1060, %v1059
        %v1106 = vpack.c.bf16 %v1062, %v1061
        %v1107 = vpack.c.bf16 %v1064, %v1063
        %v1108 = vpack.c.bf16 %v1066, %v1065
        %v1109 = vpack.c.bf16 %v1068, %v1067
        %v1110 = vpack.c.bf16 %v1070, %v1069
        %v1111 = vpack.c.bf16 %v1072, %v1071
        %v1112 = vpack.c.bf16 %v1074, %v1073
        %v1113 = vpack.c.bf16 %v1076, %v1075
        %v1114 = vpack.c.bf16 %v1078, %v1077
        %v1115 = vpack.c.bf16 %v1080, %v1079
        %v1116 = vpack.c.bf16 %v1082, %v1081
        %v1117 = vpack.c.bf16 %v1084, %v1083
        %v1118 = vpack.c.bf16 %v1086, %v1085
        %1119 = vst [vmem:[%s325] sm:$0xff] %v1087
        %1120 = vst [vmem:[%s325 + $0x8] sm:$0xff] %v1088
        %1121 = vst [vmem:[%s325 + $0x10] sm:$0xff] %v1089
        %1122 = vst [vmem:[%s325 + $0x18] sm:$0xff] %v1090
        %1123 = vst [vmem:[%s325 + $0x20] sm:$0xff] %v1091
        %1124 = vst [vmem:[%s325 + $0x28] sm:$0xff] %v1092
        %1125 = vst [vmem:[%s325 + $0x30] sm:$0xff] %v1093
        %1126 = vst [vmem:[%s325 + $0x38] sm:$0xff] %v1094
        %1127 = vst [vmem:[%s325 + $0x40] sm:$0xff] %v1095
        %1128 = vst [vmem:[%s325 + $0x48] sm:$0xff] %v1096
        %1129 = vst [vmem:[%s325 + $0x50] sm:$0xff] %v1097
        %1130 = vst [vmem:[%s325 + $0x58] sm:$0xff] %v1098
        %1131 = vst [vmem:[%s325 + $0x60] sm:$0xff] %v1099
        %1132 = vst [vmem:[%s325 + $0x68] sm:$0xff] %v1100
        %1133 = vst [vmem:[%s325 + $0x70] sm:$0xff] %v1101
        %1134 = vst [vmem:[%s325 + $0x78] sm:$0xff] %v1102
        %1135 = vst [vmem:[%s325 + $0x80] sm:$0xff] %v1103
        %1136 = vst [vmem:[%s325 + $0x88] sm:$0xff] %v1104
        %1137 = vst [vmem:[%s325 + $0x90] sm:$0xff] %v1105
        %1138 = vst [vmem:[%s325 + $0x98] sm:$0xff] %v1106
        %1139 = vst [vmem:[%s325 + $0xa0] sm:$0xff] %v1107
        %1140 = vst [vmem:[%s325 + $0xa8] sm:$0xff] %v1108
        %1141 = vst [vmem:[%s325 + $0xb0] sm:$0xff] %v1109
        %1142 = vst [vmem:[%s325 + $0xb8] sm:$0xff] %v1110
        %1143 = vst [vmem:[%s325 + $0xc0] sm:$0xff] %v1111
        %1144 = vst [vmem:[%s325 + $0xc8] sm:$0xff] %v1112
        %1145 = vst [vmem:[%s325 + $0xd0] sm:$0xff] %v1113
        %1146 = vst [vmem:[%s325 + $0xd8] sm:$0xff] %v1114
        %1147 = vst [vmem:[%s325 + $0xe0] sm:$0xff] %v1115
        %1148 = vst [vmem:[%s325 + $0xe8] sm:$0xff] %v1116
        %1149 = vst [vmem:[%s325 + $0xf0] sm:$0xff] %v1117
        %1150 = vst [vmem:[%s325 + $0xf8] sm:$0xff] %v1118
        %v1151 = vld [vmem:[%s285] sm:$0xf]
        %v1152 = vld [vmem:[%s285 + $0x4] sm:$0xf]
        %v1153 = vld [vmem:[%s285 + $0x8] sm:$0xf]
        %v1154 = vld [vmem:[%s285 + $0xc] sm:$0xf]
        %v1155 = vld [vmem:[%s285 + $0x10] sm:$0xf]
        %v1156 = vld [vmem:[%s285 + $0x14] sm:$0xf]
        %v1157 = vld [vmem:[%s285 + $0x18] sm:$0xf]
        %v1158 = vld [vmem:[%s285 + $0x1c] sm:$0xf]
        %v1159 = vld [vmem:[%s285 + $0x20] sm:$0xf]
        %v1160 = vld [vmem:[%s285 + $0x24] sm:$0xf]
        %v1161 = vld [vmem:[%s285 + $0x28] sm:$0xf]
        %v1162 = vld [vmem:[%s285 + $0x2c] sm:$0xf]
        %v1163 = vld [vmem:[%s285 + $0x30] sm:$0xf]
        %v1164 = vld [vmem:[%s285 + $0x34] sm:$0xf]
        %v1165 = vld [vmem:[%s285 + $0x38] sm:$0xf]
        %v1166 = vld [vmem:[%s285 + $0x3c] sm:$0xf]
        %v1167 = vld [vmem:[%s285 + $0x40] sm:$0xf]
        %v1168 = vld [vmem:[%s285 + $0x44] sm:$0xf]
        %v1169 = vld [vmem:[%s285 + $0x48] sm:$0xf]
        %v1170 = vld [vmem:[%s285 + $0x4c] sm:$0xf]
        %v1171 = vld [vmem:[%s285 + $0x50] sm:$0xf]
        %v1172 = vld [vmem:[%s285 + $0x54] sm:$0xf]
        %v1173 = vld [vmem:[%s285 + $0x58] sm:$0xf]
        %v1174 = vld [vmem:[%s285 + $0x5c] sm:$0xf]
        %v1175 = vld [vmem:[%s285 + $0x60] sm:$0xf]
        %v1176 = vld [vmem:[%s285 + $0x64] sm:$0xf]
        %v1177 = vld [vmem:[%s285 + $0x68] sm:$0xf]
        %v1178 = vld [vmem:[%s285 + $0x6c] sm:$0xf]
        %v1179 = vld [vmem:[%s285 + $0x70] sm:$0xf]
        %v1180 = vld [vmem:[%s285 + $0x74] sm:$0xf]
        %v1181 = vld [vmem:[%s285 + $0x78] sm:$0xf]
        %v1182 = vld [vmem:[%s285 + $0x7c] sm:$0xf]
        %v1215 = vunpack.c.l.b16 %v1151
        %v1216 = vunpack.c.l.b16 %v1152
        %v1217 = vunpack.c.l.b16 %v1153
        %v1218 = vunpack.c.l.b16 %v1154
        %v1219 = vunpack.c.l.b16 %v1155
        %v1220 = vunpack.c.l.b16 %v1156
        %v1221 = vunpack.c.l.b16 %v1157
        %v1222 = vunpack.c.l.b16 %v1158
        %v1223 = vunpack.c.l.b16 %v1159
        %v1224 = vunpack.c.l.b16 %v1160
        %v1225 = vunpack.c.l.b16 %v1161
        %v1226 = vunpack.c.l.b16 %v1162
        %v1227 = vunpack.c.l.b16 %v1163
        %v1228 = vunpack.c.l.b16 %v1164
        %v1229 = vunpack.c.l.b16 %v1165
        %v1230 = vunpack.c.l.b16 %v1166
        %v1231 = vunpack.c.l.b16 %v1167
        %v1232 = vunpack.c.l.b16 %v1168
        %v1233 = vunpack.c.l.b16 %v1169
        %v1234 = vunpack.c.l.b16 %v1170
        %v1235 = vunpack.c.l.b16 %v1171
        %v1236 = vunpack.c.l.b16 %v1172
        %v1237 = vunpack.c.l.b16 %v1173
        %v1238 = vunpack.c.l.b16 %v1174
        %v1239 = vunpack.c.l.b16 %v1175
        %v1240 = vunpack.c.l.b16 %v1176
        %v1241 = vunpack.c.l.b16 %v1177
        %v1242 = vunpack.c.l.b16 %v1178
        %v1243 = vunpack.c.l.b16 %v1179
        %v1244 = vunpack.c.l.b16 %v1180
        %v1245 = vunpack.c.l.b16 %v1181
        %v1246 = vunpack.c.l.b16 %v1182
        %v1247 = vpack.c.b16 %v1216, %v1215
        %v1248 = vpack.c.b16 %v1218, %v1217
        %v1249 = vpack.c.b16 %v1220, %v1219
        %v1250 = vpack.c.b16 %v1222, %v1221
        %v1251 = vpack.c.b16 %v1224, %v1223
        %v1252 = vpack.c.b16 %v1226, %v1225
        %v1253 = vpack.c.b16 %v1228, %v1227
        %v1254 = vpack.c.b16 %v1230, %v1229
        %v1255 = vpack.c.b16 %v1232, %v1231
        %v1256 = vpack.c.b16 %v1234, %v1233
        %v1257 = vpack.c.b16 %v1236, %v1235
        %v1258 = vpack.c.b16 %v1238, %v1237
        %v1259 = vpack.c.b16 %v1240, %v1239
        %v1260 = vpack.c.b16 %v1242, %v1241
        %v1261 = vpack.c.b16 %v1244, %v1243
        %v1262 = vpack.c.b16 %v1246, %v1245
        %1279 = vmatpush.bf16.xpose.msra.mxu0 %v1254
        %1280 = vmatpush.bf16.xpose.msra.mxu0 %v1253
        %1281 = vmatpush.bf16.xpose.msra.mxu0 %v1252
        %1282 = vmatpush.bf16.xpose.msra.mxu0 %v1251
        %1283 = vmatpush.bf16.xpose.msra.mxu0 %v1250
        %1284 = vmatpush.bf16.xpose.msra.mxu0 %v1249
        %1285 = vmatpush.bf16.xpose.msra.mxu0 %v1248
        %1286 = vmatpush.bf16.xpose.msra.mxu0 %v1247
        %1287 = vmatmul.bf16.gmra.mxu0 %v461
        %v1288 = vpop.f32.mrf.mxu0
        %v1289 = vadd.f32 0.0, %v1288
        %v1290 = vpop.f32.mrf.mxu0
        %v1291 = vadd.f32 0.0, %v1290
        %1292 = vmatmul.bf16.gmra.mxu0 %v462
        %v1293 = vpop.f32.mrf.mxu0
        %v1294 = vadd.f32 0.0, %v1293
        %v1295 = vpop.f32.mrf.mxu0
        %v1296 = vadd.f32 0.0, %v1295
        %1297 = vmatmul.bf16.gmra.mxu0 %v463
        %v1298 = vpop.f32.mrf.mxu0
        %v1299 = vadd.f32 0.0, %v1298
        %v1300 = vpop.f32.mrf.mxu0
        %v1301 = vadd.f32 0.0, %v1300
        %1302 = vmatmul.bf16.gmra.mxu0 %v464
        %v1303 = vpop.f32.mrf.mxu0
        %v1304 = vadd.f32 0.0, %v1303
        %v1305 = vpop.f32.mrf.mxu0
        %v1306 = vadd.f32 0.0, %v1305
        %1307 = vmatmul.bf16.gmra.mxu0 %v465
        %v1308 = vpop.f32.mrf.mxu0
        %v1309 = vadd.f32 0.0, %v1308
        %v1310 = vpop.f32.mrf.mxu0
        %v1311 = vadd.f32 0.0, %v1310
        %1312 = vmatmul.bf16.gmra.mxu0 %v466
        %v1313 = vpop.f32.mrf.mxu0
        %v1314 = vadd.f32 0.0, %v1313
        %v1315 = vpop.f32.mrf.mxu0
        %v1316 = vadd.f32 0.0, %v1315
        %1317 = vmatmul.bf16.gmra.mxu0 %v467
        %v1318 = vpop.f32.mrf.mxu0
        %v1319 = vadd.f32 0.0, %v1318
        %v1320 = vpop.f32.mrf.mxu0
        %v1321 = vadd.f32 0.0, %v1320
        %1322 = vmatmul.bf16.gmra.mxu0 %v468
        %v1323 = vpop.f32.mrf.mxu0
        %v1324 = vadd.f32 0.0, %v1323
        %v1325 = vpop.f32.mrf.mxu0
        %v1326 = vadd.f32 0.0, %v1325
        %1327 = vmatmul.bf16.gmra.mxu0 %v469
        %v1328 = vpop.f32.mrf.mxu0
        %v1329 = vadd.f32 0.0, %v1328
        %v1330 = vpop.f32.mrf.mxu0
        %v1331 = vadd.f32 0.0, %v1330
        %1332 = vmatmul.bf16.gmra.mxu0 %v470
        %v1333 = vpop.f32.mrf.mxu0
        %v1334 = vadd.f32 0.0, %v1333
        %v1335 = vpop.f32.mrf.mxu0
        %v1336 = vadd.f32 0.0, %v1335
        %1337 = vmatmul.bf16.gmra.mxu0 %v471
        %v1338 = vpop.f32.mrf.mxu0
        %v1339 = vadd.f32 0.0, %v1338
        %v1340 = vpop.f32.mrf.mxu0
        %v1341 = vadd.f32 0.0, %v1340
        %1342 = vmatmul.bf16.gmra.mxu0 %v472
        %v1343 = vpop.f32.mrf.mxu0
        %v1344 = vadd.f32 0.0, %v1343
        %v1345 = vpop.f32.mrf.mxu0
        %v1346 = vadd.f32 0.0, %v1345
        %1347 = vmatmul.bf16.gmra.mxu0 %v473
        %v1348 = vpop.f32.mrf.mxu0
        %v1349 = vadd.f32 0.0, %v1348
        %v1350 = vpop.f32.mrf.mxu0
        %v1351 = vadd.f32 0.0, %v1350
        %1352 = vmatmul.bf16.gmra.mxu0 %v474
        %v1353 = vpop.f32.mrf.mxu0
        %v1354 = vadd.f32 0.0, %v1353
        %v1355 = vpop.f32.mrf.mxu0
        %v1356 = vadd.f32 0.0, %v1355
        %1357 = vmatmul.bf16.gmra.mxu0 %v475
        %v1358 = vpop.f32.mrf.mxu0
        %v1359 = vadd.f32 0.0, %v1358
        %v1360 = vpop.f32.mrf.mxu0
        %v1361 = vadd.f32 0.0, %v1360
        %1362 = vmatmul.bf16.gmra.mxu0 %v476
        %v1363 = vpop.f32.mrf.mxu0
        %v1364 = vadd.f32 0.0, %v1363
        %v1365 = vpop.f32.mrf.mxu0
        %v1366 = vadd.f32 0.0, %v1365
        %1367 = vdwg.mxu0
        %1368 = vmatpush.bf16.xpose.msra.mxu0 %v1262
        %1369 = vmatpush.bf16.xpose.msra.mxu0 %v1261
        %1370 = vmatpush.bf16.xpose.msra.mxu0 %v1260
        %1371 = vmatpush.bf16.xpose.msra.mxu0 %v1259
        %1372 = vmatpush.bf16.xpose.msra.mxu0 %v1258
        %1373 = vmatpush.bf16.xpose.msra.mxu0 %v1257
        %1374 = vmatpush.bf16.xpose.msra.mxu0 %v1256
        %1375 = vmatpush.bf16.xpose.msra.mxu0 %v1255
        %1376 = vmatmul.bf16.gmra.mxu0 %v461
        %v1377 = vpop.f32.mrf.mxu0
        %v1378 = vadd.f32 0.0, %v1377
        %v1379 = vpop.f32.mrf.mxu0
        %v1380 = vadd.f32 0.0, %v1379
        %1381 = vmatmul.bf16.gmra.mxu0 %v462
        %v1382 = vpop.f32.mrf.mxu0
        %v1383 = vadd.f32 0.0, %v1382
        %v1384 = vpop.f32.mrf.mxu0
        %v1385 = vadd.f32 0.0, %v1384
        %1386 = vmatmul.bf16.gmra.mxu0 %v463
        %v1387 = vpop.f32.mrf.mxu0
        %v1388 = vadd.f32 0.0, %v1387
        %v1389 = vpop.f32.mrf.mxu0
        %v1390 = vadd.f32 0.0, %v1389
        %1391 = vmatmul.bf16.gmra.mxu0 %v464
        %v1392 = vpop.f32.mrf.mxu0
        %v1393 = vadd.f32 0.0, %v1392
        %v1394 = vpop.f32.mrf.mxu0
        %v1395 = vadd.f32 0.0, %v1394
        %1396 = vmatmul.bf16.gmra.mxu0 %v465
        %v1397 = vpop.f32.mrf.mxu0
        %v1398 = vadd.f32 0.0, %v1397
        %v1399 = vpop.f32.mrf.mxu0
        %v1400 = vadd.f32 0.0, %v1399
        %1401 = vmatmul.bf16.gmra.mxu0 %v466
        %v1402 = vpop.f32.mrf.mxu0
        %v1403 = vadd.f32 0.0, %v1402
        %v1404 = vpop.f32.mrf.mxu0
        %v1405 = vadd.f32 0.0, %v1404
        %1406 = vmatmul.bf16.gmra.mxu0 %v467
        %v1407 = vpop.f32.mrf.mxu0
        %v1408 = vadd.f32 0.0, %v1407
        %v1409 = vpop.f32.mrf.mxu0
        %v1410 = vadd.f32 0.0, %v1409
        %1411 = vmatmul.bf16.gmra.mxu0 %v468
        %v1412 = vpop.f32.mrf.mxu0
        %v1413 = vadd.f32 0.0, %v1412
        %v1414 = vpop.f32.mrf.mxu0
        %v1415 = vadd.f32 0.0, %v1414
        %1416 = vmatmul.bf16.gmra.mxu0 %v469
        %v1417 = vpop.f32.mrf.mxu0
        %v1418 = vadd.f32 0.0, %v1417
        %v1419 = vpop.f32.mrf.mxu0
        %v1420 = vadd.f32 0.0, %v1419
        %1421 = vmatmul.bf16.gmra.mxu0 %v470
        %v1422 = vpop.f32.mrf.mxu0
        %v1423 = vadd.f32 0.0, %v1422
        %v1424 = vpop.f32.mrf.mxu0
        %v1425 = vadd.f32 0.0, %v1424
        %1426 = vmatmul.bf16.gmra.mxu0 %v471
        %v1427 = vpop.f32.mrf.mxu0
        %v1428 = vadd.f32 0.0, %v1427
        %v1429 = vpop.f32.mrf.mxu0
        %v1430 = vadd.f32 0.0, %v1429
        %1431 = vmatmul.bf16.gmra.mxu0 %v472
        %v1432 = vpop.f32.mrf.mxu0
        %v1433 = vadd.f32 0.0, %v1432
        %v1434 = vpop.f32.mrf.mxu0
        %v1435 = vadd.f32 0.0, %v1434
        %1436 = vmatmul.bf16.gmra.mxu0 %v473
        %v1437 = vpop.f32.mrf.mxu0
        %v1438 = vadd.f32 0.0, %v1437
        %v1439 = vpop.f32.mrf.mxu0
        %v1440 = vadd.f32 0.0, %v1439
        %1441 = vmatmul.bf16.gmra.mxu0 %v474
        %v1442 = vpop.f32.mrf.mxu0
        %v1443 = vadd.f32 0.0, %v1442
        %v1444 = vpop.f32.mrf.mxu0
        %v1445 = vadd.f32 0.0, %v1444
        %1446 = vmatmul.bf16.gmra.mxu0 %v475
        %v1447 = vpop.f32.mrf.mxu0
        %v1448 = vadd.f32 0.0, %v1447
        %v1449 = vpop.f32.mrf.mxu0
        %v1450 = vadd.f32 0.0, %v1449
        %1451 = vmatmul.bf16.gmra.mxu0 %v476
        %v1452 = vpop.f32.mrf.mxu0
        %v1453 = vadd.f32 0.0, %v1452
        %v1454 = vpop.f32.mrf.mxu0
        %v1455 = vadd.f32 0.0, %v1454
        %1456 = vdwg.mxu0
        %v1457 = vpack.c.bf16 %v1378, %v1289
        %v1458 = vpack.c.bf16 %v1380, %v1291
        %v1459 = vpack.c.bf16 %v1383, %v1294
        %v1460 = vpack.c.bf16 %v1385, %v1296
        %v1461 = vpack.c.bf16 %v1388, %v1299
        %v1462 = vpack.c.bf16 %v1390, %v1301
        %v1463 = vpack.c.bf16 %v1393, %v1304
        %v1464 = vpack.c.bf16 %v1395, %v1306
        %v1465 = vpack.c.bf16 %v1398, %v1309
        %v1466 = vpack.c.bf16 %v1400, %v1311
        %v1467 = vpack.c.bf16 %v1403, %v1314
        %v1468 = vpack.c.bf16 %v1405, %v1316
        %v1469 = vpack.c.bf16 %v1408, %v1319
        %v1470 = vpack.c.bf16 %v1410, %v1321
        %v1471 = vpack.c.bf16 %v1413, %v1324
        %v1472 = vpack.c.bf16 %v1415, %v1326
        %v1473 = vpack.c.bf16 %v1418, %v1329
        %v1474 = vpack.c.bf16 %v1420, %v1331
        %v1475 = vpack.c.bf16 %v1423, %v1334
        %v1476 = vpack.c.bf16 %v1425, %v1336
        %v1477 = vpack.c.bf16 %v1428, %v1339
        %v1478 = vpack.c.bf16 %v1430, %v1341
        %v1479 = vpack.c.bf16 %v1433, %v1344
        %v1480 = vpack.c.bf16 %v1435, %v1346
        %v1481 = vpack.c.bf16 %v1438, %v1349
        %v1482 = vpack.c.bf16 %v1440, %v1351
        %v1483 = vpack.c.bf16 %v1443, %v1354
        %v1484 = vpack.c.bf16 %v1445, %v1356
        %v1485 = vpack.c.bf16 %v1448, %v1359
        %v1486 = vpack.c.bf16 %v1450, %v1361
        %v1487 = vpack.c.bf16 %v1453, %v1364
        %v1488 = vpack.c.bf16 %v1455, %v1366
        %1489 = vst [vmem:[%s318] sm:$0xff] %v1457
        %1490 = vst [vmem:[%s318 + $0x8] sm:$0xff] %v1458
        %1491 = vst [vmem:[%s318 + $0x10] sm:$0xff] %v1459
        %1492 = vst [vmem:[%s318 + $0x18] sm:$0xff] %v1460
        %1493 = vst [vmem:[%s318 + $0x20] sm:$0xff] %v1461
        %1494 = vst [vmem:[%s318 + $0x28] sm:$0xff] %v1462
        %1495 = vst [vmem:[%s318 + $0x30] sm:$0xff] %v1463
        %1496 = vst [vmem:[%s318 + $0x38] sm:$0xff] %v1464
        %1497 = vst [vmem:[%s318 + $0x40] sm:$0xff] %v1465
        %1498 = vst [vmem:[%s318 + $0x48] sm:$0xff] %v1466
        %1499 = vst [vmem:[%s318 + $0x50] sm:$0xff] %v1467
        %1500 = vst [vmem:[%s318 + $0x58] sm:$0xff] %v1468
        %1501 = vst [vmem:[%s318 + $0x60] sm:$0xff] %v1469
        %1502 = vst [vmem:[%s318 + $0x68] sm:$0xff] %v1470
        %1503 = vst [vmem:[%s318 + $0x70] sm:$0xff] %v1471
        %1504 = vst [vmem:[%s318 + $0x78] sm:$0xff] %v1472
        %1505 = vst [vmem:[%s318 + $0x80] sm:$0xff] %v1473
        %1506 = vst [vmem:[%s318 + $0x88] sm:$0xff] %v1474
        %1507 = vst [vmem:[%s318 + $0x90] sm:$0xff] %v1475
        %1508 = vst [vmem:[%s318 + $0x98] sm:$0xff] %v1476
        %1509 = vst [vmem:[%s318 + $0xa0] sm:$0xff] %v1477
        %1510 = vst [vmem:[%s318 + $0xa8] sm:$0xff] %v1478
        %1511 = vst [vmem:[%s318 + $0xb0] sm:$0xff] %v1479
        %1512 = vst [vmem:[%s318 + $0xb8] sm:$0xff] %v1480
        %1513 = vst [vmem:[%s318 + $0xc0] sm:$0xff] %v1481
        %1514 = vst [vmem:[%s318 + $0xc8] sm:$0xff] %v1482
        %1515 = vst [vmem:[%s318 + $0xd0] sm:$0xff] %v1483
        %1516 = vst [vmem:[%s318 + $0xd8] sm:$0xff] %v1484
        %1517 = vst [vmem:[%s318 + $0xe0] sm:$0xff] %v1485
        %1518 = vst [vmem:[%s318 + $0xe8] sm:$0xff] %v1486
        %1519 = vst [vmem:[%s318 + $0xf0] sm:$0xff] %v1487
        %1520 = vst [vmem:[%s318 + $0xf8] sm:$0xff] %v1488
        %s1521 = sand.u32 %s128, 1
        %s1522 = scalar_lea.sflag [#allocation4], %s1521
        %s1523 = sand.u32 %s128, 1
        %s1524 = smul.addr %s1523, 256
        %s1525 = scalar_lea.vmem [#allocation8], %s1524
        %s1526 = sand.u32 %s156, 1
        %s1527 = scalar_lea.sflag [#allocation10], %s1526
        %s1528 = sand.u32 %s156, 1
        %s1529 = smul.addr %s1528, 256
        %s1530 = scalar_lea.vmem [#allocation9], %s1529
        // Predicated region
        $region45: #{tpu_custom_call.1} parent=31 // pred_check
          %p1531 = pneg %p138
        $region46: #{tpu_custom_call.1} parent=31 // pred_check_branch
          %1533 = sbr.rel (%p1531) target = $region48
        $region47: #{tpu_custom_call.1} parent=31 // pred_region
          %s1534 = smul.u32 32, %s32
          %s1535 = smul.u32 2, %s33
          %1537 = vsyncadd %s1522, 0
          %s1538 = smul.addr %s1534, 4
          %s1539 = sadd.s32 %s1535, %s1538
          %s1540 = smul.addr %s1539, 4
          %s1541 = scalar_lea.hbm %s3, %s1540
          %s1542 = sshll.u32 %s1525, 4
          %s1543 = int_to_ptr.vmem [resolvable:$true] %s1542
          %s1544 = sshll.u32 %s1541, 4
          %s1545 = int_to_ptr.hbm [resolvable:$true] %s1544
          %1550 = dma.vmem_to_hbm [thread:$0]  %s1543, 4096, %s1545, %s1522, 128, 256, 8
        $region48: #{tpu_custom_call.1} parent=31 // pred_fallthru
          _
        // Predicated region
        $region49: #{tpu_custom_call.1} parent=31 // pred_check
          %p1551 = pneg %p166
        $region50: #{tpu_custom_call.1} parent=31 // pred_check_branch
          %1553 = sbr.rel (%p1551) target = $region52
        $region51: #{tpu_custom_call.1} parent=31 // pred_region
          %s1554 = smul.u32 32, %s32
          %s1555 = smul.u32 2, %s33
          %1557 = vsyncadd %s1527, 0
          %s1558 = smul.addr %s1554, 4
          %s1559 = sadd.s32 %s1555, %s1558
          %s1560 = smul.addr %s1559, 4
          %s1561 = scalar_lea.hbm %s4, %s1560
          %s1562 = sshll.u32 %s1530, 4
          %s1563 = int_to_ptr.vmem [resolvable:$true] %s1562
          %s1564 = sshll.u32 %s1561, 4
          %s1565 = int_to_ptr.hbm [resolvable:$true] %s1564
          %1570 = dma.vmem_to_hbm [thread:$0]  %s1563, 4096, %s1565, %s1527, 128, 256, 8
        $region52: #{tpu_custom_call.1} parent=31 // pred_fallthru
          _
      $region32: #{tpu_custom_call.1} parent=5 // pred_fallthru
        _
      %p1571 = scmp.le.s32.totalorder 2, %s23
      // Predicated region
      $region53: #{tpu_custom_call.1} parent=5 // pred_check
        %p1572 = pneg %p1571
      $region54: #{tpu_custom_call.1} parent=5 // pred_check_branch
        %1574 = sbr.rel (%p1572) target = $region56
      $region55: #{tpu_custom_call.1} parent=5 // pred_region
        %s1575 = ssub.s32 %s23, 2
        // Predicated region
        $region57: #{tpu_custom_call.1} parent=55 // pred_check
          %p1576 = pneg %p144
        $region58: #{tpu_custom_call.1} parent=55 // pred_check_branch
          %1578 = sbr.rel (%p1576) target = $region60
        $region59: #{tpu_custom_call.1} parent=55 // pred_region
          %s1579 = sand.u32 %s129, 1
          %s1580 = scalar_lea.sflag [#allocation4], %s1579
          %s1581 = sand.u32 %s129, 1
          %s1582 = smul.addr %s1581, 256
          %s1583 = scalar_lea.vmem [#allocation8], %s1582
          %1585 = dma.done %s1580, 4096
        $region60: #{tpu_custom_call.1} parent=55 // pred_fallthru
          _
        // Predicated region
        $region61: #{tpu_custom_call.1} parent=55 // pred_check
          %p1586 = pneg %p172
        $region62: #{tpu_custom_call.1} parent=55 // pred_check_branch
          %1588 = sbr.rel (%p1586) target = $region64
        $region63: #{tpu_custom_call.1} parent=55 // pred_region
          %s1589 = sand.u32 %s157, 1
          %s1590 = scalar_lea.sflag [#allocation10], %s1589
          %s1591 = sand.u32 %s157, 1
          %s1592 = smul.addr %s1591, 256
          %s1593 = scalar_lea.vmem [#allocation9], %s1592
          %1595 = dma.done %s1590, 4096
        $region64: #{tpu_custom_call.1} parent=55 // pred_fallthru
          _
      $region56: #{tpu_custom_call.1} parent=5 // pred_fallthru
        _
    $region6: #{tpu_custom_call.1} parent=1 // loop_footer
      %s27 = sadd.s32 1, %s23
    $region7: #{tpu_custom_call.1} parent=1 // loop_footer_branch
      %22 = sbr.rel target = $region3
    $region8: #{tpu_custom_call.1} parent=1 // loop_exit
      _
    %1596 = vsyncpa [#allocation3], 1
    %s1597 = scalar_lea.sflag [#allocation3], 1
    %1598 = vsyncpa %s1597, 1
    %1599 = vsyncpa [#allocation6], 1
    %s1600 = scalar_lea.sflag [#allocation6], 1
    %1601 = vsyncpa %s1600, 1
    %1602 = vsyncpa [#allocation4], 1
    %s1603 = scalar_lea.sflag [#allocation4], 1
    %1604 = vsyncpa %s1603, 1
    %1605 = vsyncpa [#allocation10], 1
    %s1606 = scalar_lea.sflag [#allocation10], 1
    %1607 = vsyncpa %s1606, 1

</llo_original>
